<compile_context>
chip_gen: v6e
topology: v6e:2x2x1
jax: 0.10.0
libtpu: 0.0.40
codegen_flags: <defaults>
</compile_context>

<pallas_src>
import functools

import jax
import jax.numpy as jnp
from jax.experimental import pallas as pl
from jax.experimental.pallas import tpu as pltpu


_LANE = 128
# Padded-block-size threshold below which we use a single grid step (per-step
# overhead ~0.35us dominates DMA time for such sizes).
_SMALL_BLOCK_BYTES = 2 * 1024 * 1024


def _round_up(x, m):
    return (x + m - 1) // m * m


def _vmem_budget():
    """(per-input-tile byte budget, vmem_limit_bytes), sized off physical VMEM."""
    phys = 64 * 1024 * 1024  # conservative default (v7x-sized) if query fails
    try:
        phys = int(pltpu.get_tpu_info().vmem_capacity_bytes)
    except Exception:
        pass
    # Inputs are double-buffered by the BlockSpec pipeline, and the (tile_r, 1)
    # output block pads to tile_r/8 VMEM tiles, so keep a healthy margin.
    tile_bytes = max(2 * 1024 * 1024, min(16 * 1024 * 1024, phys // 6))
    vmem_limit = max(32 * 1024 * 1024,
                     min(int(phys * 0.75), phys - 16 * 1024 * 1024))
    return tile_bytes, vmem_limit


def _choose_tiles(r, hw, itemsize):
    """Pick (tile_r, tile_hw, vmem_limit). tile_hw == hw means no H*W tiling."""
    tile_bytes, vmem_limit = _vmem_budget()
    lane_hw = _round_up(hw, _LANE)          # physical (lane-padded) width
    row_bytes = lane_hw * itemsize          # VMEM bytes of one row

    if 128 * row_bytes <= tile_bytes:
        # Full-width rows fit comfortably: never tile H*W.
        tile_hw = hw
        total_bytes = _round_up(r, 8) * row_bytes
        if total_bytes <= _SMALL_BLOCK_BYTES:
            # Tiny input: one block, one grid step (block == full array dims).
            tile_r = r
        else:
            # Row tiles in multiples of 128 (legal for any dtype's sublane
            # packing and for the (tile_r, 1) output block), sized to budget.
            max_rows = max(_LANE, (tile_bytes // row_bytes) // _LANE * _LANE)
            tile_r = min(max_rows, 2048)
            num_r = pl.cdiv(r, tile_r)
            if num_r > 1 and num_r % 2 == 1:
                # Prefer an even number of row tiles (v7x has 2 TensorCores).
                alt = _round_up(pl.cdiv(r, num_r + 1), _LANE)
                if _LANE <= alt <= max_rows:
                    tile_r = alt
            if tile_r >= r:
                tile_r = r
    else:
        # Very large spatial extent: also tile H*W (multiples of 128 lanes).
        tile_r = min(256, r)
        tile_hw = max(_LANE, (tile_bytes // (tile_r * itemsize)) // _LANE * _LANE)
        # Branch condition guarantees tile_hw < hw, so the hw grid has >= 2 steps.

    return tile_r, tile_hw, vmem_limit


def _mean_kernel_direct(x_ref, o_ref, *, inv_hw):
    """Whole H*W in one block: no scratch, no predicated regions."""
    x = x_ref[...].astype(jnp.float32)
    s = jnp.sum(x, axis=-1, keepdims=True)          # (tile_r, 1) f32, exact
    o_ref[...] = (s * inv_hw).astype(o_ref.dtype)


def _mean_kernel_acc(x_ref, o_ref, acc_ref, *, inv_hw, hw, tile_hw):
    """H*W tiled: f32 accumulator with init/finalize and ragged-edge masking."""
    k = pl.program_id(1)

    @pl.when(k == 0)
    def _init():
        acc_ref[...] = jnp.zeros_like(acc_ref)

    x = x_ref[...].astype(jnp.float32)
    if hw % tile_hw != 0:
        # No wrapper-side padding: the last H*W block's trailing lanes hold
        # garbage, so mask them before summing.
        col = jax.lax.broadcasted_iota(jnp.int32, x.shape, 1) + k * tile_hw
        x = jnp.where(col < hw, x, 0.0)
    acc_ref[...] += jnp.sum(x, axis=-1, keepdims=True)

    @pl.when(k == pl.num_programs(1) - 1)
    def _finish():
        o_ref[...] = (acc_ref[...] * inv_hw).astype(o_ref.dtype)


def spatial_mean(x):
    """x: (N, C, H, W) -> (N, C, 1, 1), mean over H and W (keepdim=True)."""
    n, c, h, w = x.shape
    r = n * c
    hw = h * w
    x2 = x.reshape(r, hw)  # free: merges contiguous trailing dims

    itemsize = jnp.dtype(x.dtype).itemsize
    tile_r, tile_hw, vmem_limit = _choose_tiles(r, hw, itemsize)
    num_r = pl.cdiv(r, tile_r)
    inv_hw = 1.0 / float(hw)

    if tile_hw == hw:
        kernel = functools.partial(_mean_kernel_direct, inv_hw=inv_hw)
        grid = (num_r,)
        in_specs = [pl.BlockSpec((tile_r, hw), lambda i: (i, 0))]
        out_specs = pl.BlockSpec((tile_r, 1), lambda i: (i, 0))
        scratch = []
        dims = ("parallel",)
    else:
        num_hw = pl.cdiv(hw, tile_hw)
        kernel = functools.partial(
            _mean_kernel_acc, inv_hw=inv_hw, hw=hw, tile_hw=tile_hw)
        grid = (num_r, num_hw)  # reduction (hw) axis last
        in_specs = [pl.BlockSpec((tile_r, tile_hw), lambda i, k: (i, k))]
        out_specs = pl.BlockSpec((tile_r, 1), lambda i, k: (i, 0))
        scratch = [pltpu.VMEM((tile_r, 1), jnp.float32)]
        dims = ("parallel", "arbitrary")

    out = pl.pallas_call(
        kernel,
        out_shape=jax.ShapeDtypeStruct((r, 1), x.dtype),
        grid_spec=pltpu.PrefetchScalarGridSpec(
            num_scalar_prefetch=0,
            grid=grid,
            in_specs=in_specs,
            out_specs=out_specs,
            scratch_shapes=scratch,
        ),
        compiler_params=pltpu.CompilerParams(
            dimension_semantics=dims,
            vmem_limit_bytes=vmem_limit,
        ),
    )(x2)

    return out.reshape(n, c, 1, 1)


if __name__ == "__main__":
    # Shape from the original module: (1, 2064, 7, 7) (~0.4 MiB, ragged 49-lane
    # spatial extent) -> exercises the single-grid-step, no-pad, no-scratch path.
    key = jax.random.PRNGKey(0)
    x = jax.random.normal(key, (1, 2064, 7, 7), dtype=jnp.float32)

    y = spatial_mean(x)
    jax.block_until_ready(y)

    # Sanity check against plain JAX reference.
    y_ref = jnp.mean(x, axis=(2, 3), keepdims=True)
    assert y.shape == (1, 2064, 1, 1), y.shape
    assert jnp.allclose(y, y_ref, atol=1e-5, rtol=1e-5), "mismatch vs reference"

    print("KERNEL_OK")
</pallas_src>

<mosaic_0001>
module attributes {stable_mosaic.version = 11 : i64} {
  func.func @_mean_kernel_direct(%arg0: i32, %arg1: memref<2064x49xf32, #tpu.memory_space<vmem>>, %arg2: memref<2064x1xf32, #tpu.memory_space<vmem>>) attributes {dimension_semantics = [#tpu.dimension_semantics<parallel>], iteration_bounds = array<i64: 1>, scalar_prefetch = 0 : i64, scratch_operands = 0 : i64, tpu.core_type = #tpu.core_type<tc>, window_params = [{transform_indices = @transform_0, window_bounds = array<i64: 2064, 49>}, {transform_indices = @transform_1, window_bounds = array<i64: 2064, 1>}]} {
    %c0 = arith.constant 0 : index
    %c0_0 = arith.constant 0 : index
    %0 = vector.load %arg1[%c0, %c0_0] : memref<2064x49xf32, #tpu.memory_space<vmem>>, vector<2064x49xf32>
    %cst = arith.constant dense<0.000000e+00> : vector<2064xf32>
    %1 = vector.multi_reduction <add>, %0, %cst [1] : vector<2064x49xf32> to vector<2064xf32>
    %2 = vector.shape_cast %1 : vector<2064xf32> to vector<2064x1xf32>
    %cst_1 = arith.constant 0.0204081628 : f32
    %3 = vector.broadcast %cst_1 : f32 to vector<2064x1xf32>
    %4 = arith.mulf %2, %3 : vector<2064x1xf32>
    %c0_2 = arith.constant 0 : index
    %c0_3 = arith.constant 0 : index
    %5 = vector.load %arg2[%c0_2, %c0_3] : memref<2064x1xf32, #tpu.memory_space<vmem>>, vector<2064x1xf32>
    tpu.vector_store %arg2[%c0_2, %c0_3], %4 {strides = array<i32>} : memref<2064x1xf32, #tpu.memory_space<vmem>>, vector<2064x1xf32>,
    return
  }
  func.func @transform_0(%arg0: i32) -> (i32, i32) {
    %c0_i32 = arith.constant 0 : i32
    %c0_i32_0 = arith.constant 0 : i32
    return %arg0, %c0_i32 : i32, i32
  }
  func.func @transform_1(%arg0: i32) -> (i32, i32) {
    %c0_i32 = arith.constant 0 : i32
    %c0_i32_0 = arith.constant 0 : i32
    return %arg0, %c0_i32 : i32, i32
  }
}

</mosaic_0001>

<llo_original>
// kernel: tpu_custom_call.1
$region0: #{tpu_custom_call.1}
  #allocation0 [shape = 'u32[]', space=smem, size = 0x4, offset = 0x4, fixed_abs, tag = 'smem constant byte address 0x4 - core index']
  #allocation1 [shape = 'u32[144,128]{1,0:T(1,128)}', space=vmem, size = 0x12000, scoped, tag = 'internal scratch']
  %s0 = inlined_call_operand.vmem [shape: f32[2064,49], index: 0, kind: input, shape index: {}]
  %s1 = inlined_call_operand.vmem [shape: f32[2064,1], index: 1, kind: output, shape index: {}]
  %s2 = sld [smem:[#allocation0]]
  $region14: #{tpu_custom_call.1} parent=0
    _
  %s4 = ssub.s32 1, %s2
  %s5 = scalar_select 0, %s4, %s2
  // Predicated region
  $region2: #{tpu_custom_call.1} parent=0 // pred_check
    _
  $region3: #{tpu_custom_call.1} parent=0 // pred_check_branch
    %7 = sbr.rel (0) target = $region5
  $region4: #{tpu_custom_call.1} parent=0 // pred_region
    _
  $region5: #{tpu_custom_call.1} parent=0 // pred_fallthru
    _
  %v8 = vld [vmem:[%s0] sm:$0xff]
  %v9 = vld [vmem:[%s0 + $0x8] sm:$0xff]
  %v10 = vld [vmem:[%s0 + $0x10] sm:$0xff]
  %v11 = vld [vmem:[%s0 + $0x18] sm:$0xff]
  %v12 = vld [vmem:[%s0 + $0x20] sm:$0xff]
  %v13 = vld [vmem:[%s0 + $0x28] sm:$0xff]
  %v14 = vld [vmem:[%s0 + $0x30] sm:$0xff]
  %v15 = vld [vmem:[%s0 + $0x38] sm:$0xff]
  %v16 = vld [vmem:[%s0 + $0x40] sm:$0xff]
  %v17 = vld [vmem:[%s0 + $0x48] sm:$0xff]
  %v18 = vld [vmem:[%s0 + $0x50] sm:$0xff]
  %v19 = vld [vmem:[%s0 + $0x58] sm:$0xff]
  %v20 = vld [vmem:[%s0 + $0x60] sm:$0xff]
  %v21 = vld [vmem:[%s0 + $0x68] sm:$0xff]
  %v22 = vld [vmem:[%s0 + $0x70] sm:$0xff]
  %v23 = vld [vmem:[%s0 + $0x78] sm:$0xff]
  %v24 = vld [vmem:[%s0 + $0x80] sm:$0xff]
  %v25 = vld [vmem:[%s0 + $0x88] sm:$0xff]
  %v26 = vld [vmem:[%s0 + $0x90] sm:$0xff]
  %v27 = vld [vmem:[%s0 + $0x98] sm:$0xff]
  %v28 = vld [vmem:[%s0 + $0xa0] sm:$0xff]
  %v29 = vld [vmem:[%s0 + $0xa8] sm:$0xff]
  %v30 = vld [vmem:[%s0 + $0xb0] sm:$0xff]
  %v31 = vld [vmem:[%s0 + $0xb8] sm:$0xff]
  %v32 = vld [vmem:[%s0 + $0xc0] sm:$0xff]
  %v33 = vld [vmem:[%s0 + $0xc8] sm:$0xff]
  %v34 = vld [vmem:[%s0 + $0xd0] sm:$0xff]
  %v35 = vld [vmem:[%s0 + $0xd8] sm:$0xff]
  %v36 = vld [vmem:[%s0 + $0xe0] sm:$0xff]
  %v37 = vld [vmem:[%s0 + $0xe8] sm:$0xff]
  %v38 = vld [vmem:[%s0 + $0xf0] sm:$0xff]
  %v39 = vld [vmem:[%s0 + $0xf8] sm:$0xff]
  %v40 = vld [vmem:[%s0 + $0x100] sm:$0xff]
  %v41 = vld [vmem:[%s0 + $0x108] sm:$0xff]
  %v42 = vld [vmem:[%s0 + $0x110] sm:$0xff]
  %v43 = vld [vmem:[%s0 + $0x118] sm:$0xff]
  %v44 = vld [vmem:[%s0 + $0x120] sm:$0xff]
  %v45 = vld [vmem:[%s0 + $0x128] sm:$0xff]
  %v46 = vld [vmem:[%s0 + $0x130] sm:$0xff]
  %v47 = vld [vmem:[%s0 + $0x138] sm:$0xff]
  %v48 = vld [vmem:[%s0 + $0x140] sm:$0xff]
  %v49 = vld [vmem:[%s0 + $0x148] sm:$0xff]
  %v50 = vld [vmem:[%s0 + $0x150] sm:$0xff]
  %v51 = vld [vmem:[%s0 + $0x158] sm:$0xff]
  %v52 = vld [vmem:[%s0 + $0x160] sm:$0xff]
  %v53 = vld [vmem:[%s0 + $0x168] sm:$0xff]
  %v54 = vld [vmem:[%s0 + $0x170] sm:$0xff]
  %v55 = vld [vmem:[%s0 + $0x178] sm:$0xff]
  %v56 = vld [vmem:[%s0 + $0x180] sm:$0xff]
  %v57 = vld [vmem:[%s0 + $0x188] sm:$0xff]
  %v58 = vld [vmem:[%s0 + $0x190] sm:$0xff]
  %v59 = vld [vmem:[%s0 + $0x198] sm:$0xff]
  %v60 = vld [vmem:[%s0 + $0x1a0] sm:$0xff]
  %v61 = vld [vmem:[%s0 + $0x1a8] sm:$0xff]
  %v62 = vld [vmem:[%s0 + $0x1b0] sm:$0xff]
  %v63 = vld [vmem:[%s0 + $0x1b8] sm:$0xff]
  %v64 = vld [vmem:[%s0 + $0x1c0] sm:$0xff]
  %v65 = vld [vmem:[%s0 + $0x1c8] sm:$0xff]
  %v66 = vld [vmem:[%s0 + $0x1d0] sm:$0xff]
  %v67 = vld [vmem:[%s0 + $0x1d8] sm:$0xff]
  %v68 = vld [vmem:[%s0 + $0x1e0] sm:$0xff]
  %v69 = vld [vmem:[%s0 + $0x1e8] sm:$0xff]
  %v70 = vld [vmem:[%s0 + $0x1f0] sm:$0xff]
  %v71 = vld [vmem:[%s0 + $0x1f8] sm:$0xff]
  %v72 = vld [vmem:[%s0 + $0x200] sm:$0xff]
  %v73 = vld [vmem:[%s0 + $0x208] sm:$0xff]
  %v74 = vld [vmem:[%s0 + $0x210] sm:$0xff]
  %v75 = vld [vmem:[%s0 + $0x218] sm:$0xff]
  %v76 = vld [vmem:[%s0 + $0x220] sm:$0xff]
  %v77 = vld [vmem:[%s0 + $0x228] sm:$0xff]
  %v78 = vld [vmem:[%s0 + $0x230] sm:$0xff]
  %v79 = vld [vmem:[%s0 + $0x238] sm:$0xff]
  %v80 = vld [vmem:[%s0 + $0x240] sm:$0xff]
  %v81 = vld [vmem:[%s0 + $0x248] sm:$0xff]
  %v82 = vld [vmem:[%s0 + $0x250] sm:$0xff]
  %v83 = vld [vmem:[%s0 + $0x258] sm:$0xff]
  %v84 = vld [vmem:[%s0 + $0x260] sm:$0xff]
  %v85 = vld [vmem:[%s0 + $0x268] sm:$0xff]
  %v86 = vld [vmem:[%s0 + $0x270] sm:$0xff]
  %v87 = vld [vmem:[%s0 + $0x278] sm:$0xff]
  %v88 = vld [vmem:[%s0 + $0x280] sm:$0xff]
  %v89 = vld [vmem:[%s0 + $0x288] sm:$0xff]
  %v90 = vld [vmem:[%s0 + $0x290] sm:$0xff]
  %v91 = vld [vmem:[%s0 + $0x298] sm:$0xff]
  %v92 = vld [vmem:[%s0 + $0x2a0] sm:$0xff]
  %v93 = vld [vmem:[%s0 + $0x2a8] sm:$0xff]
  %v94 = vld [vmem:[%s0 + $0x2b0] sm:$0xff]
  %v95 = vld [vmem:[%s0 + $0x2b8] sm:$0xff]
  %v96 = vld [vmem:[%s0 + $0x2c0] sm:$0xff]
  %v97 = vld [vmem:[%s0 + $0x2c8] sm:$0xff]
  %v98 = vld [vmem:[%s0 + $0x2d0] sm:$0xff]
  %v99 = vld [vmem:[%s0 + $0x2d8] sm:$0xff]
  %v100 = vld [vmem:[%s0 + $0x2e0] sm:$0xff]
  %v101 = vld [vmem:[%s0 + $0x2e8] sm:$0xff]
  %v102 = vld [vmem:[%s0 + $0x2f0] sm:$0xff]
  %v103 = vld [vmem:[%s0 + $0x2f8] sm:$0xff]
  %v104 = vld [vmem:[%s0 + $0x300] sm:$0xff]
  %v105 = vld [vmem:[%s0 + $0x308] sm:$0xff]
  %v106 = vld [vmem:[%s0 + $0x310] sm:$0xff]
  %v107 = vld [vmem:[%s0 + $0x318] sm:$0xff]
  %v108 = vld [vmem:[%s0 + $0x320] sm:$0xff]
  %v109 = vld [vmem:[%s0 + $0x328] sm:$0xff]
  %v110 = vld [vmem:[%s0 + $0x330] sm:$0xff]
  %v111 = vld [vmem:[%s0 + $0x338] sm:$0xff]
  %v112 = vld [vmem:[%s0 + $0x340] sm:$0xff]
  %v113 = vld [vmem:[%s0 + $0x348] sm:$0xff]
  %v114 = vld [vmem:[%s0 + $0x350] sm:$0xff]
  %v115 = vld [vmem:[%s0 + $0x358] sm:$0xff]
  %v116 = vld [vmem:[%s0 + $0x360] sm:$0xff]
  %v117 = vld [vmem:[%s0 + $0x368] sm:$0xff]
  %v118 = vld [vmem:[%s0 + $0x370] sm:$0xff]
  %v119 = vld [vmem:[%s0 + $0x378] sm:$0xff]
  %v120 = vld [vmem:[%s0 + $0x380] sm:$0xff]
  %v121 = vld [vmem:[%s0 + $0x388] sm:$0xff]
  %v122 = vld [vmem:[%s0 + $0x390] sm:$0xff]
  %v123 = vld [vmem:[%s0 + $0x398] sm:$0xff]
  %v124 = vld [vmem:[%s0 + $0x3a0] sm:$0xff]
  %v125 = vld [vmem:[%s0 + $0x3a8] sm:$0xff]
  %v126 = vld [vmem:[%s0 + $0x3b0] sm:$0xff]
  %v127 = vld [vmem:[%s0 + $0x3b8] sm:$0xff]
  %v128 = vld [vmem:[%s0 + $0x3c0] sm:$0xff]
  %v129 = vld [vmem:[%s0 + $0x3c8] sm:$0xff]
  %v130 = vld [vmem:[%s0 + $0x3d0] sm:$0xff]
  %v131 = vld [vmem:[%s0 + $0x3d8] sm:$0xff]
  %v132 = vld [vmem:[%s0 + $0x3e0] sm:$0xff]
  %v133 = vld [vmem:[%s0 + $0x3e8] sm:$0xff]
  %v134 = vld [vmem:[%s0 + $0x3f0] sm:$0xff]
  %v135 = vld [vmem:[%s0 + $0x3f8] sm:$0xff]
  %v136 = vld [vmem:[%s0 + $0x400] sm:$0xff]
  %v137 = vld [vmem:[%s0 + $0x408] sm:$0xff]
  %v138 = vld [vmem:[%s0 + $0x410] sm:$0xff]
  %v139 = vld [vmem:[%s0 + $0x418] sm:$0xff]
  %v140 = vld [vmem:[%s0 + $0x420] sm:$0xff]
  %v141 = vld [vmem:[%s0 + $0x428] sm:$0xff]
  %v142 = vld [vmem:[%s0 + $0x430] sm:$0xff]
  %v143 = vld [vmem:[%s0 + $0x438] sm:$0xff]
  %v144 = vld [vmem:[%s0 + $0x440] sm:$0xff]
  %v145 = vld [vmem:[%s0 + $0x448] sm:$0xff]
  %v146 = vld [vmem:[%s0 + $0x450] sm:$0xff]
  %v147 = vld [vmem:[%s0 + $0x458] sm:$0xff]
  %v148 = vld [vmem:[%s0 + $0x460] sm:$0xff]
  %v149 = vld [vmem:[%s0 + $0x468] sm:$0xff]
  %v150 = vld [vmem:[%s0 + $0x470] sm:$0xff]
  %v151 = vld [vmem:[%s0 + $0x478] sm:$0xff]
  %v152 = vld [vmem:[%s0 + $0x480] sm:$0xff]
  %v153 = vld [vmem:[%s0 + $0x488] sm:$0xff]
  %v154 = vld [vmem:[%s0 + $0x490] sm:$0xff]
  %v155 = vld [vmem:[%s0 + $0x498] sm:$0xff]
  %v156 = vld [vmem:[%s0 + $0x4a0] sm:$0xff]
  %v157 = vld [vmem:[%s0 + $0x4a8] sm:$0xff]
  %v158 = vld [vmem:[%s0 + $0x4b0] sm:$0xff]
  %v159 = vld [vmem:[%s0 + $0x4b8] sm:$0xff]
  %v160 = vld [vmem:[%s0 + $0x4c0] sm:$0xff]
  %v161 = vld [vmem:[%s0 + $0x4c8] sm:$0xff]
  %v162 = vld [vmem:[%s0 + $0x4d0] sm:$0xff]
  %v163 = vld [vmem:[%s0 + $0x4d8] sm:$0xff]
  %v164 = vld [vmem:[%s0 + $0x4e0] sm:$0xff]
  %v165 = vld [vmem:[%s0 + $0x4e8] sm:$0xff]
  %v166 = vld [vmem:[%s0 + $0x4f0] sm:$0xff]
  %v167 = vld [vmem:[%s0 + $0x4f8] sm:$0xff]
  %v168 = vld [vmem:[%s0 + $0x500] sm:$0xff]
  %v169 = vld [vmem:[%s0 + $0x508] sm:$0xff]
  %v170 = vld [vmem:[%s0 + $0x510] sm:$0xff]
  %v171 = vld [vmem:[%s0 + $0x518] sm:$0xff]
  %v172 = vld [vmem:[%s0 + $0x520] sm:$0xff]
  %v173 = vld [vmem:[%s0 + $0x528] sm:$0xff]
  %v174 = vld [vmem:[%s0 + $0x530] sm:$0xff]
  %v175 = vld [vmem:[%s0 + $0x538] sm:$0xff]
  %v176 = vld [vmem:[%s0 + $0x540] sm:$0xff]
  %v177 = vld [vmem:[%s0 + $0x548] sm:$0xff]
  %v178 = vld [vmem:[%s0 + $0x550] sm:$0xff]
  %v179 = vld [vmem:[%s0 + $0x558] sm:$0xff]
  %v180 = vld [vmem:[%s0 + $0x560] sm:$0xff]
  %v181 = vld [vmem:[%s0 + $0x568] sm:$0xff]
  %v182 = vld [vmem:[%s0 + $0x570] sm:$0xff]
  %v183 = vld [vmem:[%s0 + $0x578] sm:$0xff]
  %v184 = vld [vmem:[%s0 + $0x580] sm:$0xff]
  %v185 = vld [vmem:[%s0 + $0x588] sm:$0xff]
  %v186 = vld [vmem:[%s0 + $0x590] sm:$0xff]
  %v187 = vld [vmem:[%s0 + $0x598] sm:$0xff]
  %v188 = vld [vmem:[%s0 + $0x5a0] sm:$0xff]
  %v189 = vld [vmem:[%s0 + $0x5a8] sm:$0xff]
  %v190 = vld [vmem:[%s0 + $0x5b0] sm:$0xff]
  %v191 = vld [vmem:[%s0 + $0x5b8] sm:$0xff]
  %v192 = vld [vmem:[%s0 + $0x5c0] sm:$0xff]
  %v193 = vld [vmem:[%s0 + $0x5c8] sm:$0xff]
  %v194 = vld [vmem:[%s0 + $0x5d0] sm:$0xff]
  %v195 = vld [vmem:[%s0 + $0x5d8] sm:$0xff]
  %v196 = vld [vmem:[%s0 + $0x5e0] sm:$0xff]
  %v197 = vld [vmem:[%s0 + $0x5e8] sm:$0xff]
  %v198 = vld [vmem:[%s0 + $0x5f0] sm:$0xff]
  %v199 = vld [vmem:[%s0 + $0x5f8] sm:$0xff]
  %v200 = vld [vmem:[%s0 + $0x600] sm:$0xff]
  %v201 = vld [vmem:[%s0 + $0x608] sm:$0xff]
  %v202 = vld [vmem:[%s0 + $0x610] sm:$0xff]
  %v203 = vld [vmem:[%s0 + $0x618] sm:$0xff]
  %v204 = vld [vmem:[%s0 + $0x620] sm:$0xff]
  %v205 = vld [vmem:[%s0 + $0x628] sm:$0xff]
  %v206 = vld [vmem:[%s0 + $0x630] sm:$0xff]
  %v207 = vld [vmem:[%s0 + $0x638] sm:$0xff]
  %v208 = vld [vmem:[%s0 + $0x640] sm:$0xff]
  %v209 = vld [vmem:[%s0 + $0x648] sm:$0xff]
  %v210 = vld [vmem:[%s0 + $0x650] sm:$0xff]
  %v211 = vld [vmem:[%s0 + $0x658] sm:$0xff]
  %v212 = vld [vmem:[%s0 + $0x660] sm:$0xff]
  %v213 = vld [vmem:[%s0 + $0x668] sm:$0xff]
  %v214 = vld [vmem:[%s0 + $0x670] sm:$0xff]
  %v215 = vld [vmem:[%s0 + $0x678] sm:$0xff]
  %v216 = vld [vmem:[%s0 + $0x680] sm:$0xff]
  %v217 = vld [vmem:[%s0 + $0x688] sm:$0xff]
  %v218 = vld [vmem:[%s0 + $0x690] sm:$0xff]
  %v219 = vld [vmem:[%s0 + $0x698] sm:$0xff]
  %v220 = vld [vmem:[%s0 + $0x6a0] sm:$0xff]
  %v221 = vld [vmem:[%s0 + $0x6a8] sm:$0xff]
  %v222 = vld [vmem:[%s0 + $0x6b0] sm:$0xff]
  %v223 = vld [vmem:[%s0 + $0x6b8] sm:$0xff]
  %v224 = vld [vmem:[%s0 + $0x6c0] sm:$0xff]
  %v225 = vld [vmem:[%s0 + $0x6c8] sm:$0xff]
  %v226 = vld [vmem:[%s0 + $0x6d0] sm:$0xff]
  %v227 = vld [vmem:[%s0 + $0x6d8] sm:$0xff]
  %v228 = vld [vmem:[%s0 + $0x6e0] sm:$0xff]
  %v229 = vld [vmem:[%s0 + $0x6e8] sm:$0xff]
  %v230 = vld [vmem:[%s0 + $0x6f0] sm:$0xff]
  %v231 = vld [vmem:[%s0 + $0x6f8] sm:$0xff]
  %v232 = vld [vmem:[%s0 + $0x700] sm:$0xff]
  %v233 = vld [vmem:[%s0 + $0x708] sm:$0xff]
  %v234 = vld [vmem:[%s0 + $0x710] sm:$0xff]
  %v235 = vld [vmem:[%s0 + $0x718] sm:$0xff]
  %v236 = vld [vmem:[%s0 + $0x720] sm:$0xff]
  %v237 = vld [vmem:[%s0 + $0x728] sm:$0xff]
  %v238 = vld [vmem:[%s0 + $0x730] sm:$0xff]
  %v239 = vld [vmem:[%s0 + $0x738] sm:$0xff]
  %v240 = vld [vmem:[%s0 + $0x740] sm:$0xff]
  %v241 = vld [vmem:[%s0 + $0x748] sm:$0xff]
  %v242 = vld [vmem:[%s0 + $0x750] sm:$0xff]
  %v243 = vld [vmem:[%s0 + $0x758] sm:$0xff]
  %v244 = vld [vmem:[%s0 + $0x760] sm:$0xff]
  %v245 = vld [vmem:[%s0 + $0x768] sm:$0xff]
  %v246 = vld [vmem:[%s0 + $0x770] sm:$0xff]
  %v247 = vld [vmem:[%s0 + $0x778] sm:$0xff]
  %v248 = vld [vmem:[%s0 + $0x780] sm:$0xff]
  %v249 = vld [vmem:[%s0 + $0x788] sm:$0xff]
  %v250 = vld [vmem:[%s0 + $0x790] sm:$0xff]
  %v251 = vld [vmem:[%s0 + $0x798] sm:$0xff]
  %v252 = vld [vmem:[%s0 + $0x7a0] sm:$0xff]
  %v253 = vld [vmem:[%s0 + $0x7a8] sm:$0xff]
  %v254 = vld [vmem:[%s0 + $0x7b0] sm:$0xff]
  %v255 = vld [vmem:[%s0 + $0x7b8] sm:$0xff]
  %v256 = vld [vmem:[%s0 + $0x7c0] sm:$0xff]
  %v257 = vld [vmem:[%s0 + $0x7c8] sm:$0xff]
  %v258 = vld [vmem:[%s0 + $0x7d0] sm:$0xff]
  %v259 = vld [vmem:[%s0 + $0x7d8] sm:$0xff]
  %v260 = vld [vmem:[%s0 + $0x7e0] sm:$0xff]
  %v261 = vld [vmem:[%s0 + $0x7e8] sm:$0xff]
  %v262 = vld [vmem:[%s0 + $0x7f0] sm:$0xff]
  %v263 = vld [vmem:[%s0 + $0x7f8] sm:$0xff]
  %v264 = vld [vmem:[%s0 + $0x800] sm:$0xff]
  %v265 = vld [vmem:[%s0 + $0x808] sm:$0xff]
  %vm266 = vcmask 400384
  %v267 = vsel %vm266, %v8, 0.0
  %268 = vadd.xlane.f32.xlu0 %v267
  %v269 = vpop.xlane.xlu0 %268
  %v270 = vsel %vm266, %v9, 0.0
  %271 = vadd.xlane.f32.xlu0 %v270
  %v272 = vpop.xlane.xlu0 %271
  %v273 = vsel %vm266, %v10, 0.0
  %274 = vadd.xlane.f32.xlu0 %v273
  %v275 = vpop.xlane.xlu0 %274
  %v276 = vsel %vm266, %v11, 0.0
  %277 = vadd.xlane.f32.xlu0 %v276
  %v278 = vpop.xlane.xlu0 %277
  %v279 = vsel %vm266, %v12, 0.0
  %280 = vadd.xlane.f32.xlu0 %v279
  %v281 = vpop.xlane.xlu0 %280
  %v282 = vsel %vm266, %v13, 0.0
  %283 = vadd.xlane.f32.xlu0 %v282
  %v284 = vpop.xlane.xlu0 %283
  %v285 = vsel %vm266, %v14, 0.0
  %286 = vadd.xlane.f32.xlu0 %v285
  %v287 = vpop.xlane.xlu0 %286
  %v288 = vsel %vm266, %v15, 0.0
  %289 = vadd.xlane.f32.xlu0 %v288
  %v290 = vpop.xlane.xlu0 %289
  %v291 = vsel %vm266, %v16, 0.0
  %292 = vadd.xlane.f32.xlu0 %v291
  %v293 = vpop.xlane.xlu0 %292
  %v294 = vsel %vm266, %v17, 0.0
  %295 = vadd.xlane.f32.xlu0 %v294
  %v296 = vpop.xlane.xlu0 %295
  %v297 = vsel %vm266, %v18, 0.0
  %298 = vadd.xlane.f32.xlu0 %v297
  %v299 = vpop.xlane.xlu0 %298
  %v300 = vsel %vm266, %v19, 0.0
  %301 = vadd.xlane.f32.xlu0 %v300
  %v302 = vpop.xlane.xlu0 %301
  %v303 = vsel %vm266, %v20, 0.0
  %304 = vadd.xlane.f32.xlu0 %v303
  %v305 = vpop.xlane.xlu0 %304
  %v306 = vsel %vm266, %v21, 0.0
  %307 = vadd.xlane.f32.xlu0 %v306
  %v308 = vpop.xlane.xlu0 %307
  %v309 = vsel %vm266, %v22, 0.0
  %310 = vadd.xlane.f32.xlu0 %v309
  %v311 = vpop.xlane.xlu0 %310
  %v312 = vsel %vm266, %v23, 0.0
  %313 = vadd.xlane.f32.xlu0 %v312
  %v314 = vpop.xlane.xlu0 %313
  %v315 = vsel %vm266, %v24, 0.0
  %316 = vadd.xlane.f32.xlu0 %v315
  %v317 = vpop.xlane.xlu0 %316
  %v318 = vsel %vm266, %v25, 0.0
  %319 = vadd.xlane.f32.xlu0 %v318
  %v320 = vpop.xlane.xlu0 %319
  %v321 = vsel %vm266, %v26, 0.0
  %322 = vadd.xlane.f32.xlu0 %v321
  %v323 = vpop.xlane.xlu0 %322
  %v324 = vsel %vm266, %v27, 0.0
  %325 = vadd.xlane.f32.xlu0 %v324
  %v326 = vpop.xlane.xlu0 %325
  %v327 = vsel %vm266, %v28, 0.0
  %328 = vadd.xlane.f32.xlu0 %v327
  %v329 = vpop.xlane.xlu0 %328
  %v330 = vsel %vm266, %v29, 0.0
  %331 = vadd.xlane.f32.xlu0 %v330
  %v332 = vpop.xlane.xlu0 %331
  %v333 = vsel %vm266, %v30, 0.0
  %334 = vadd.xlane.f32.xlu0 %v333
  %v335 = vpop.xlane.xlu0 %334
  %v336 = vsel %vm266, %v31, 0.0
  %337 = vadd.xlane.f32.xlu0 %v336
  %v338 = vpop.xlane.xlu0 %337
  %v339 = vsel %vm266, %v32, 0.0
  %340 = vadd.xlane.f32.xlu0 %v339
  %v341 = vpop.xlane.xlu0 %340
  %v342 = vsel %vm266, %v33, 0.0
  %343 = vadd.xlane.f32.xlu0 %v342
  %v344 = vpop.xlane.xlu0 %343
  %v345 = vsel %vm266, %v34, 0.0
  %346 = vadd.xlane.f32.xlu0 %v345
  %v347 = vpop.xlane.xlu0 %346
  %v348 = vsel %vm266, %v35, 0.0
  %349 = vadd.xlane.f32.xlu0 %v348
  %v350 = vpop.xlane.xlu0 %349
  %v351 = vsel %vm266, %v36, 0.0
  %352 = vadd.xlane.f32.xlu0 %v351
  %v353 = vpop.xlane.xlu0 %352
  %v354 = vsel %vm266, %v37, 0.0
  %355 = vadd.xlane.f32.xlu0 %v354
  %v356 = vpop.xlane.xlu0 %355
  %v357 = vsel %vm266, %v38, 0.0
  %358 = vadd.xlane.f32.xlu0 %v357
  %v359 = vpop.xlane.xlu0 %358
  %v360 = vsel %vm266, %v39, 0.0
  %361 = vadd.xlane.f32.xlu0 %v360
  %v362 = vpop.xlane.xlu0 %361
  %v363 = vsel %vm266, %v40, 0.0
  %364 = vadd.xlane.f32.xlu0 %v363
  %v365 = vpop.xlane.xlu0 %364
  %v366 = vsel %vm266, %v41, 0.0
  %367 = vadd.xlane.f32.xlu0 %v366
  %v368 = vpop.xlane.xlu0 %367
  %v369 = vsel %vm266, %v42, 0.0
  %370 = vadd.xlane.f32.xlu0 %v369
  %v371 = vpop.xlane.xlu0 %370
  %v372 = vsel %vm266, %v43, 0.0
  %373 = vadd.xlane.f32.xlu0 %v372
  %v374 = vpop.xlane.xlu0 %373
  %v375 = vsel %vm266, %v44, 0.0
  %376 = vadd.xlane.f32.xlu0 %v375
  %v377 = vpop.xlane.xlu0 %376
  %v378 = vsel %vm266, %v45, 0.0
  %379 = vadd.xlane.f32.xlu0 %v378
  %v380 = vpop.xlane.xlu0 %379
  %v381 = vsel %vm266, %v46, 0.0
  %382 = vadd.xlane.f32.xlu0 %v381
  %v383 = vpop.xlane.xlu0 %382
  %v384 = vsel %vm266, %v47, 0.0
  %385 = vadd.xlane.f32.xlu0 %v384
  %v386 = vpop.xlane.xlu0 %385
  %v387 = vsel %vm266, %v48, 0.0
  %388 = vadd.xlane.f32.xlu0 %v387
  %v389 = vpop.xlane.xlu0 %388
  %v390 = vsel %vm266, %v49, 0.0
  %391 = vadd.xlane.f32.xlu0 %v390
  %v392 = vpop.xlane.xlu0 %391
  %v393 = vsel %vm266, %v50, 0.0
  %394 = vadd.xlane.f32.xlu0 %v393
  %v395 = vpop.xlane.xlu0 %394
  %v396 = vsel %vm266, %v51, 0.0
  %397 = vadd.xlane.f32.xlu0 %v396
  %v398 = vpop.xlane.xlu0 %397
  %v399 = vsel %vm266, %v52, 0.0
  %400 = vadd.xlane.f32.xlu0 %v399
  %v401 = vpop.xlane.xlu0 %400
  %v402 = vsel %vm266, %v53, 0.0
  %403 = vadd.xlane.f32.xlu0 %v402
  %v404 = vpop.xlane.xlu0 %403
  %v405 = vsel %vm266, %v54, 0.0
  %406 = vadd.xlane.f32.xlu0 %v405
  %v407 = vpop.xlane.xlu0 %406
  %v408 = vsel %vm266, %v55, 0.0
  %409 = vadd.xlane.f32.xlu0 %v408
  %v410 = vpop.xlane.xlu0 %409
  %v411 = vsel %vm266, %v56, 0.0
  %412 = vadd.xlane.f32.xlu0 %v411
  %v413 = vpop.xlane.xlu0 %412
  %v414 = vsel %vm266, %v57, 0.0
  %415 = vadd.xlane.f32.xlu0 %v414
  %v416 = vpop.xlane.xlu0 %415
  %v417 = vsel %vm266, %v58, 0.0
  %418 = vadd.xlane.f32.xlu0 %v417
  %v419 = vpop.xlane.xlu0 %418
  %v420 = vsel %vm266, %v59, 0.0
  %421 = vadd.xlane.f32.xlu0 %v420
  %v422 = vpop.xlane.xlu0 %421
  %v423 = vsel %vm266, %v60, 0.0
  %424 = vadd.xlane.f32.xlu0 %v423
  %v425 = vpop.xlane.xlu0 %424
  %v426 = vsel %vm266, %v61, 0.0
  %427 = vadd.xlane.f32.xlu0 %v426
  %v428 = vpop.xlane.xlu0 %427
  %v429 = vsel %vm266, %v62, 0.0
  %430 = vadd.xlane.f32.xlu0 %v429
  %v431 = vpop.xlane.xlu0 %430
  %v432 = vsel %vm266, %v63, 0.0
  %433 = vadd.xlane.f32.xlu0 %v432
  %v434 = vpop.xlane.xlu0 %433
  %v435 = vsel %vm266, %v64, 0.0
  %436 = vadd.xlane.f32.xlu0 %v435
  %v437 = vpop.xlane.xlu0 %436
  %v438 = vsel %vm266, %v65, 0.0
  %439 = vadd.xlane.f32.xlu0 %v438
  %v440 = vpop.xlane.xlu0 %439
  %v441 = vsel %vm266, %v66, 0.0
  %442 = vadd.xlane.f32.xlu0 %v441
  %v443 = vpop.xlane.xlu0 %442
  %v444 = vsel %vm266, %v67, 0.0
  %445 = vadd.xlane.f32.xlu0 %v444
  %v446 = vpop.xlane.xlu0 %445
  %v447 = vsel %vm266, %v68, 0.0
  %448 = vadd.xlane.f32.xlu0 %v447
  %v449 = vpop.xlane.xlu0 %448
  %v450 = vsel %vm266, %v69, 0.0
  %451 = vadd.xlane.f32.xlu0 %v450
  %v452 = vpop.xlane.xlu0 %451
  %v453 = vsel %vm266, %v70, 0.0
  %454 = vadd.xlane.f32.xlu0 %v453
  %v455 = vpop.xlane.xlu0 %454
  %v456 = vsel %vm266, %v71, 0.0
  %457 = vadd.xlane.f32.xlu0 %v456
  %v458 = vpop.xlane.xlu0 %457
  %v459 = vsel %vm266, %v72, 0.0
  %460 = vadd.xlane.f32.xlu0 %v459
  %v461 = vpop.xlane.xlu0 %460
  %v462 = vsel %vm266, %v73, 0.0
  %463 = vadd.xlane.f32.xlu0 %v462
  %v464 = vpop.xlane.xlu0 %463
  %v465 = vsel %vm266, %v74, 0.0
  %466 = vadd.xlane.f32.xlu0 %v465
  %v467 = vpop.xlane.xlu0 %466
  %v468 = vsel %vm266, %v75, 0.0
  %469 = vadd.xlane.f32.xlu0 %v468
  %v470 = vpop.xlane.xlu0 %469
  %v471 = vsel %vm266, %v76, 0.0
  %472 = vadd.xlane.f32.xlu0 %v471
  %v473 = vpop.xlane.xlu0 %472
  %v474 = vsel %vm266, %v77, 0.0
  %475 = vadd.xlane.f32.xlu0 %v474
  %v476 = vpop.xlane.xlu0 %475
  %v477 = vsel %vm266, %v78, 0.0
  %478 = vadd.xlane.f32.xlu0 %v477
  %v479 = vpop.xlane.xlu0 %478
  %v480 = vsel %vm266, %v79, 0.0
  %481 = vadd.xlane.f32.xlu0 %v480
  %v482 = vpop.xlane.xlu0 %481
  %v483 = vsel %vm266, %v80, 0.0
  %484 = vadd.xlane.f32.xlu0 %v483
  %v485 = vpop.xlane.xlu0 %484
  %v486 = vsel %vm266, %v81, 0.0
  %487 = vadd.xlane.f32.xlu0 %v486
  %v488 = vpop.xlane.xlu0 %487
  %v489 = vsel %vm266, %v82, 0.0
  %490 = vadd.xlane.f32.xlu0 %v489
  %v491 = vpop.xlane.xlu0 %490
  %v492 = vsel %vm266, %v83, 0.0
  %493 = vadd.xlane.f32.xlu0 %v492
  %v494 = vpop.xlane.xlu0 %493
  %v495 = vsel %vm266, %v84, 0.0
  %496 = vadd.xlane.f32.xlu0 %v495
  %v497 = vpop.xlane.xlu0 %496
  %v498 = vsel %vm266, %v85, 0.0
  %499 = vadd.xlane.f32.xlu0 %v498
  %v500 = vpop.xlane.xlu0 %499
  %v501 = vsel %vm266, %v86, 0.0
  %502 = vadd.xlane.f32.xlu0 %v501
  %v503 = vpop.xlane.xlu0 %502
  %v504 = vsel %vm266, %v87, 0.0
  %505 = vadd.xlane.f32.xlu0 %v504
  %v506 = vpop.xlane.xlu0 %505
  %v507 = vsel %vm266, %v88, 0.0
  %508 = vadd.xlane.f32.xlu0 %v507
  %v509 = vpop.xlane.xlu0 %508
  %v510 = vsel %vm266, %v89, 0.0
  %511 = vadd.xlane.f32.xlu0 %v510
  %v512 = vpop.xlane.xlu0 %511
  %v513 = vsel %vm266, %v90, 0.0
  %514 = vadd.xlane.f32.xlu0 %v513
  %v515 = vpop.xlane.xlu0 %514
  %v516 = vsel %vm266, %v91, 0.0
  %517 = vadd.xlane.f32.xlu0 %v516
  %v518 = vpop.xlane.xlu0 %517
  %v519 = vsel %vm266, %v92, 0.0
  %520 = vadd.xlane.f32.xlu0 %v519
  %v521 = vpop.xlane.xlu0 %520
  %v522 = vsel %vm266, %v93, 0.0
  %523 = vadd.xlane.f32.xlu0 %v522
  %v524 = vpop.xlane.xlu0 %523
  %v525 = vsel %vm266, %v94, 0.0
  %526 = vadd.xlane.f32.xlu0 %v525
  %v527 = vpop.xlane.xlu0 %526
  %v528 = vsel %vm266, %v95, 0.0
  %529 = vadd.xlane.f32.xlu0 %v528
  %v530 = vpop.xlane.xlu0 %529
  %v531 = vsel %vm266, %v96, 0.0
  %532 = vadd.xlane.f32.xlu0 %v531
  %v533 = vpop.xlane.xlu0 %532
  %v534 = vsel %vm266, %v97, 0.0
  %535 = vadd.xlane.f32.xlu0 %v534
  %v536 = vpop.xlane.xlu0 %535
  %v537 = vsel %vm266, %v98, 0.0
  %538 = vadd.xlane.f32.xlu0 %v537
  %v539 = vpop.xlane.xlu0 %538
  %v540 = vsel %vm266, %v99, 0.0
  %541 = vadd.xlane.f32.xlu0 %v540
  %v542 = vpop.xlane.xlu0 %541
  %v543 = vsel %vm266, %v100, 0.0
  %544 = vadd.xlane.f32.xlu0 %v543
  %v545 = vpop.xlane.xlu0 %544
  %v546 = vsel %vm266, %v101, 0.0
  %547 = vadd.xlane.f32.xlu0 %v546
  %v548 = vpop.xlane.xlu0 %547
  %v549 = vsel %vm266, %v102, 0.0
  %550 = vadd.xlane.f32.xlu0 %v549
  %v551 = vpop.xlane.xlu0 %550
  %v552 = vsel %vm266, %v103, 0.0
  %553 = vadd.xlane.f32.xlu0 %v552
  %v554 = vpop.xlane.xlu0 %553
  %v555 = vsel %vm266, %v104, 0.0
  %556 = vadd.xlane.f32.xlu0 %v555
  %v557 = vpop.xlane.xlu0 %556
  %v558 = vsel %vm266, %v105, 0.0
  %559 = vadd.xlane.f32.xlu0 %v558
  %v560 = vpop.xlane.xlu0 %559
  %v561 = vsel %vm266, %v106, 0.0
  %562 = vadd.xlane.f32.xlu0 %v561
  %v563 = vpop.xlane.xlu0 %562
  %v564 = vsel %vm266, %v107, 0.0
  %565 = vadd.xlane.f32.xlu0 %v564
  %v566 = vpop.xlane.xlu0 %565
  %v567 = vsel %vm266, %v108, 0.0
  %568 = vadd.xlane.f32.xlu0 %v567
  %v569 = vpop.xlane.xlu0 %568
  %v570 = vsel %vm266, %v109, 0.0
  %571 = vadd.xlane.f32.xlu0 %v570
  %v572 = vpop.xlane.xlu0 %571
  %v573 = vsel %vm266, %v110, 0.0
  %574 = vadd.xlane.f32.xlu0 %v573
  %v575 = vpop.xlane.xlu0 %574
  %v576 = vsel %vm266, %v111, 0.0
  %577 = vadd.xlane.f32.xlu0 %v576
  %v578 = vpop.xlane.xlu0 %577
  %v579 = vsel %vm266, %v112, 0.0
  %580 = vadd.xlane.f32.xlu0 %v579
  %v581 = vpop.xlane.xlu0 %580
  %v582 = vsel %vm266, %v113, 0.0
  %583 = vadd.xlane.f32.xlu0 %v582
  %v584 = vpop.xlane.xlu0 %583
  %v585 = vsel %vm266, %v114, 0.0
  %586 = vadd.xlane.f32.xlu0 %v585
  %v587 = vpop.xlane.xlu0 %586
  %v588 = vsel %vm266, %v115, 0.0
  %589 = vadd.xlane.f32.xlu0 %v588
  %v590 = vpop.xlane.xlu0 %589
  %v591 = vsel %vm266, %v116, 0.0
  %592 = vadd.xlane.f32.xlu0 %v591
  %v593 = vpop.xlane.xlu0 %592
  %v594 = vsel %vm266, %v117, 0.0
  %595 = vadd.xlane.f32.xlu0 %v594
  %v596 = vpop.xlane.xlu0 %595
  %v597 = vsel %vm266, %v118, 0.0
  %598 = vadd.xlane.f32.xlu0 %v597
  %v599 = vpop.xlane.xlu0 %598
  %v600 = vsel %vm266, %v119, 0.0
  %601 = vadd.xlane.f32.xlu0 %v600
  %v602 = vpop.xlane.xlu0 %601
  %v603 = vsel %vm266, %v120, 0.0
  %604 = vadd.xlane.f32.xlu0 %v603
  %v605 = vpop.xlane.xlu0 %604
  %v606 = vsel %vm266, %v121, 0.0
  %607 = vadd.xlane.f32.xlu0 %v606
  %v608 = vpop.xlane.xlu0 %607
  %v609 = vsel %vm266, %v122, 0.0
  %610 = vadd.xlane.f32.xlu0 %v609
  %v611 = vpop.xlane.xlu0 %610
  %v612 = vsel %vm266, %v123, 0.0
  %613 = vadd.xlane.f32.xlu0 %v612
  %v614 = vpop.xlane.xlu0 %613
  %v615 = vsel %vm266, %v124, 0.0
  %616 = vadd.xlane.f32.xlu0 %v615
  %v617 = vpop.xlane.xlu0 %616
  %v618 = vsel %vm266, %v125, 0.0
  %619 = vadd.xlane.f32.xlu0 %v618
  %v620 = vpop.xlane.xlu0 %619
  %v621 = vsel %vm266, %v126, 0.0
  %622 = vadd.xlane.f32.xlu0 %v621
  %v623 = vpop.xlane.xlu0 %622
  %v624 = vsel %vm266, %v127, 0.0
  %625 = vadd.xlane.f32.xlu0 %v624
  %v626 = vpop.xlane.xlu0 %625
  %v627 = vsel %vm266, %v128, 0.0
  %628 = vadd.xlane.f32.xlu0 %v627
  %v629 = vpop.xlane.xlu0 %628
  %v630 = vsel %vm266, %v129, 0.0
  %631 = vadd.xlane.f32.xlu0 %v630
  %v632 = vpop.xlane.xlu0 %631
  %v633 = vsel %vm266, %v130, 0.0
  %634 = vadd.xlane.f32.xlu0 %v633
  %v635 = vpop.xlane.xlu0 %634
  %v636 = vsel %vm266, %v131, 0.0
  %637 = vadd.xlane.f32.xlu0 %v636
  %v638 = vpop.xlane.xlu0 %637
  %v639 = vsel %vm266, %v132, 0.0
  %640 = vadd.xlane.f32.xlu0 %v639
  %v641 = vpop.xlane.xlu0 %640
  %v642 = vsel %vm266, %v133, 0.0
  %643 = vadd.xlane.f32.xlu0 %v642
  %v644 = vpop.xlane.xlu0 %643
  %v645 = vsel %vm266, %v134, 0.0
  %646 = vadd.xlane.f32.xlu0 %v645
  %v647 = vpop.xlane.xlu0 %646
  %v648 = vsel %vm266, %v135, 0.0
  %649 = vadd.xlane.f32.xlu0 %v648
  %v650 = vpop.xlane.xlu0 %649
  %v651 = vsel %vm266, %v136, 0.0
  %652 = vadd.xlane.f32.xlu0 %v651
  %v653 = vpop.xlane.xlu0 %652
  %v654 = vsel %vm266, %v137, 0.0
  %655 = vadd.xlane.f32.xlu0 %v654
  %v656 = vpop.xlane.xlu0 %655
  %v657 = vsel %vm266, %v138, 0.0
  %658 = vadd.xlane.f32.xlu0 %v657
  %v659 = vpop.xlane.xlu0 %658
  %v660 = vsel %vm266, %v139, 0.0
  %661 = vadd.xlane.f32.xlu0 %v660
  %v662 = vpop.xlane.xlu0 %661
  %v663 = vsel %vm266, %v140, 0.0
  %664 = vadd.xlane.f32.xlu0 %v663
  %v665 = vpop.xlane.xlu0 %664
  %v666 = vsel %vm266, %v141, 0.0
  %667 = vadd.xlane.f32.xlu0 %v666
  %v668 = vpop.xlane.xlu0 %667
  %v669 = vsel %vm266, %v142, 0.0
  %670 = vadd.xlane.f32.xlu0 %v669
  %v671 = vpop.xlane.xlu0 %670
  %v672 = vsel %vm266, %v143, 0.0
  %673 = vadd.xlane.f32.xlu0 %v672
  %v674 = vpop.xlane.xlu0 %673
  %v675 = vsel %vm266, %v144, 0.0
  %676 = vadd.xlane.f32.xlu0 %v675
  %v677 = vpop.xlane.xlu0 %676
  %v678 = vsel %vm266, %v145, 0.0
  %679 = vadd.xlane.f32.xlu0 %v678
  %v680 = vpop.xlane.xlu0 %679
  %v681 = vsel %vm266, %v146, 0.0
  %682 = vadd.xlane.f32.xlu0 %v681
  %v683 = vpop.xlane.xlu0 %682
  %v684 = vsel %vm266, %v147, 0.0
  %685 = vadd.xlane.f32.xlu0 %v684
  %v686 = vpop.xlane.xlu0 %685
  %v687 = vsel %vm266, %v148, 0.0
  %688 = vadd.xlane.f32.xlu0 %v687
  %v689 = vpop.xlane.xlu0 %688
  %v690 = vsel %vm266, %v149, 0.0
  %691 = vadd.xlane.f32.xlu0 %v690
  %v692 = vpop.xlane.xlu0 %691
  %v693 = vsel %vm266, %v150, 0.0
  %694 = vadd.xlane.f32.xlu0 %v693
  %v695 = vpop.xlane.xlu0 %694
  %v696 = vsel %vm266, %v151, 0.0
  %697 = vadd.xlane.f32.xlu0 %v696
  %v698 = vpop.xlane.xlu0 %697
  %v699 = vsel %vm266, %v152, 0.0
  %700 = vadd.xlane.f32.xlu0 %v699
  %v701 = vpop.xlane.xlu0 %700
  %v702 = vsel %vm266, %v153, 0.0
  %703 = vadd.xlane.f32.xlu0 %v702
  %v704 = vpop.xlane.xlu0 %703
  %v705 = vsel %vm266, %v154, 0.0
  %706 = vadd.xlane.f32.xlu0 %v705
  %v707 = vpop.xlane.xlu0 %706
  %v708 = vsel %vm266, %v155, 0.0
  %709 = vadd.xlane.f32.xlu0 %v708
  %v710 = vpop.xlane.xlu0 %709
  %v711 = vsel %vm266, %v156, 0.0
  %712 = vadd.xlane.f32.xlu0 %v711
  %v713 = vpop.xlane.xlu0 %712
  %v714 = vsel %vm266, %v157, 0.0
  %715 = vadd.xlane.f32.xlu0 %v714
  %v716 = vpop.xlane.xlu0 %715
  %v717 = vsel %vm266, %v158, 0.0
  %718 = vadd.xlane.f32.xlu0 %v717
  %v719 = vpop.xlane.xlu0 %718
  %v720 = vsel %vm266, %v159, 0.0
  %721 = vadd.xlane.f32.xlu0 %v720
  %v722 = vpop.xlane.xlu0 %721
  %v723 = vsel %vm266, %v160, 0.0
  %724 = vadd.xlane.f32.xlu0 %v723
  %v725 = vpop.xlane.xlu0 %724
  %v726 = vsel %vm266, %v161, 0.0
  %727 = vadd.xlane.f32.xlu0 %v726
  %v728 = vpop.xlane.xlu0 %727
  %v729 = vsel %vm266, %v162, 0.0
  %730 = vadd.xlane.f32.xlu0 %v729
  %v731 = vpop.xlane.xlu0 %730
  %v732 = vsel %vm266, %v163, 0.0
  %733 = vadd.xlane.f32.xlu0 %v732
  %v734 = vpop.xlane.xlu0 %733
  %v735 = vsel %vm266, %v164, 0.0
  %736 = vadd.xlane.f32.xlu0 %v735
  %v737 = vpop.xlane.xlu0 %736
  %v738 = vsel %vm266, %v165, 0.0
  %739 = vadd.xlane.f32.xlu0 %v738
  %v740 = vpop.xlane.xlu0 %739
  %v741 = vsel %vm266, %v166, 0.0
  %742 = vadd.xlane.f32.xlu0 %v741
  %v743 = vpop.xlane.xlu0 %742
  %v744 = vsel %vm266, %v167, 0.0
  %745 = vadd.xlane.f32.xlu0 %v744
  %v746 = vpop.xlane.xlu0 %745
  %v747 = vsel %vm266, %v168, 0.0
  %748 = vadd.xlane.f32.xlu0 %v747
  %v749 = vpop.xlane.xlu0 %748
  %v750 = vsel %vm266, %v169, 0.0
  %751 = vadd.xlane.f32.xlu0 %v750
  %v752 = vpop.xlane.xlu0 %751
  %v753 = vsel %vm266, %v170, 0.0
  %754 = vadd.xlane.f32.xlu0 %v753
  %v755 = vpop.xlane.xlu0 %754
  %v756 = vsel %vm266, %v171, 0.0
  %757 = vadd.xlane.f32.xlu0 %v756
  %v758 = vpop.xlane.xlu0 %757
  %v759 = vsel %vm266, %v172, 0.0
  %760 = vadd.xlane.f32.xlu0 %v759
  %v761 = vpop.xlane.xlu0 %760
  %v762 = vsel %vm266, %v173, 0.0
  %763 = vadd.xlane.f32.xlu0 %v762
  %v764 = vpop.xlane.xlu0 %763
  %v765 = vsel %vm266, %v174, 0.0
  %766 = vadd.xlane.f32.xlu0 %v765
  %v767 = vpop.xlane.xlu0 %766
  %v768 = vsel %vm266, %v175, 0.0
  %769 = vadd.xlane.f32.xlu0 %v768
  %v770 = vpop.xlane.xlu0 %769
  %v771 = vsel %vm266, %v176, 0.0
  %772 = vadd.xlane.f32.xlu0 %v771
  %v773 = vpop.xlane.xlu0 %772
  %v774 = vsel %vm266, %v177, 0.0
  %775 = vadd.xlane.f32.xlu0 %v774
  %v776 = vpop.xlane.xlu0 %775
  %v777 = vsel %vm266, %v178, 0.0
  %778 = vadd.xlane.f32.xlu0 %v777
  %v779 = vpop.xlane.xlu0 %778
  %v780 = vsel %vm266, %v179, 0.0
  %781 = vadd.xlane.f32.xlu0 %v780
  %v782 = vpop.xlane.xlu0 %781
  %v783 = vsel %vm266, %v180, 0.0
  %784 = vadd.xlane.f32.xlu0 %v783
  %v785 = vpop.xlane.xlu0 %784
  %v786 = vsel %vm266, %v181, 0.0
  %787 = vadd.xlane.f32.xlu0 %v786
  %v788 = vpop.xlane.xlu0 %787
  %v789 = vsel %vm266, %v182, 0.0
  %790 = vadd.xlane.f32.xlu0 %v789
  %v791 = vpop.xlane.xlu0 %790
  %v792 = vsel %vm266, %v183, 0.0
  %793 = vadd.xlane.f32.xlu0 %v792
  %v794 = vpop.xlane.xlu0 %793
  %v795 = vsel %vm266, %v184, 0.0
  %796 = vadd.xlane.f32.xlu0 %v795
  %v797 = vpop.xlane.xlu0 %796
  %v798 = vsel %vm266, %v185, 0.0
  %799 = vadd.xlane.f32.xlu0 %v798
  %v800 = vpop.xlane.xlu0 %799
  %v801 = vsel %vm266, %v186, 0.0
  %802 = vadd.xlane.f32.xlu0 %v801
  %v803 = vpop.xlane.xlu0 %802
  %v804 = vsel %vm266, %v187, 0.0
  %805 = vadd.xlane.f32.xlu0 %v804
  %v806 = vpop.xlane.xlu0 %805
  %v807 = vsel %vm266, %v188, 0.0
  %808 = vadd.xlane.f32.xlu0 %v807
  %v809 = vpop.xlane.xlu0 %808
  %v810 = vsel %vm266, %v189, 0.0
  %811 = vadd.xlane.f32.xlu0 %v810
  %v812 = vpop.xlane.xlu0 %811
  %v813 = vsel %vm266, %v190, 0.0
  %814 = vadd.xlane.f32.xlu0 %v813
  %v815 = vpop.xlane.xlu0 %814
  %v816 = vsel %vm266, %v191, 0.0
  %817 = vadd.xlane.f32.xlu0 %v816
  %v818 = vpop.xlane.xlu0 %817
  %v819 = vsel %vm266, %v192, 0.0
  %820 = vadd.xlane.f32.xlu0 %v819
  %v821 = vpop.xlane.xlu0 %820
  %v822 = vsel %vm266, %v193, 0.0
  %823 = vadd.xlane.f32.xlu0 %v822
  %v824 = vpop.xlane.xlu0 %823
  %v825 = vsel %vm266, %v194, 0.0
  %826 = vadd.xlane.f32.xlu0 %v825
  %v827 = vpop.xlane.xlu0 %826
  %v828 = vsel %vm266, %v195, 0.0
  %829 = vadd.xlane.f32.xlu0 %v828
  %v830 = vpop.xlane.xlu0 %829
  %v831 = vsel %vm266, %v196, 0.0
  %832 = vadd.xlane.f32.xlu0 %v831
  %v833 = vpop.xlane.xlu0 %832
  %v834 = vsel %vm266, %v197, 0.0
  %835 = vadd.xlane.f32.xlu0 %v834
  %v836 = vpop.xlane.xlu0 %835
  %v837 = vsel %vm266, %v198, 0.0
  %838 = vadd.xlane.f32.xlu0 %v837
  %v839 = vpop.xlane.xlu0 %838
  %v840 = vsel %vm266, %v199, 0.0
  %841 = vadd.xlane.f32.xlu0 %v840
  %v842 = vpop.xlane.xlu0 %841
  %v843 = vsel %vm266, %v200, 0.0
  %844 = vadd.xlane.f32.xlu0 %v843
  %v845 = vpop.xlane.xlu0 %844
  %v846 = vsel %vm266, %v201, 0.0
  %847 = vadd.xlane.f32.xlu0 %v846
  %v848 = vpop.xlane.xlu0 %847
  %v849 = vsel %vm266, %v202, 0.0
  %850 = vadd.xlane.f32.xlu0 %v849
  %v851 = vpop.xlane.xlu0 %850
  %v852 = vsel %vm266, %v203, 0.0
  %853 = vadd.xlane.f32.xlu0 %v852
  %v854 = vpop.xlane.xlu0 %853
  %v855 = vsel %vm266, %v204, 0.0
  %856 = vadd.xlane.f32.xlu0 %v855
  %v857 = vpop.xlane.xlu0 %856
  %v858 = vsel %vm266, %v205, 0.0
  %859 = vadd.xlane.f32.xlu0 %v858
  %v860 = vpop.xlane.xlu0 %859
  %v861 = vsel %vm266, %v206, 0.0
  %862 = vadd.xlane.f32.xlu0 %v861
  %v863 = vpop.xlane.xlu0 %862
  %v864 = vsel %vm266, %v207, 0.0
  %865 = vadd.xlane.f32.xlu0 %v864
  %v866 = vpop.xlane.xlu0 %865
  %v867 = vsel %vm266, %v208, 0.0
  %868 = vadd.xlane.f32.xlu0 %v867
  %v869 = vpop.xlane.xlu0 %868
  %v870 = vsel %vm266, %v209, 0.0
  %871 = vadd.xlane.f32.xlu0 %v870
  %v872 = vpop.xlane.xlu0 %871
  %v873 = vsel %vm266, %v210, 0.0
  %874 = vadd.xlane.f32.xlu0 %v873
  %v875 = vpop.xlane.xlu0 %874
  %v876 = vsel %vm266, %v211, 0.0
  %877 = vadd.xlane.f32.xlu0 %v876
  %v878 = vpop.xlane.xlu0 %877
  %v879 = vsel %vm266, %v212, 0.0
  %880 = vadd.xlane.f32.xlu0 %v879
  %v881 = vpop.xlane.xlu0 %880
  %v882 = vsel %vm266, %v213, 0.0
  %883 = vadd.xlane.f32.xlu0 %v882
  %v884 = vpop.xlane.xlu0 %883
  %v885 = vsel %vm266, %v214, 0.0
  %886 = vadd.xlane.f32.xlu0 %v885
  %v887 = vpop.xlane.xlu0 %886
  %v888 = vsel %vm266, %v215, 0.0
  %889 = vadd.xlane.f32.xlu0 %v888
  %v890 = vpop.xlane.xlu0 %889
  %v891 = vsel %vm266, %v216, 0.0
  %892 = vadd.xlane.f32.xlu0 %v891
  %v893 = vpop.xlane.xlu0 %892
  %v894 = vsel %vm266, %v217, 0.0
  %895 = vadd.xlane.f32.xlu0 %v894
  %v896 = vpop.xlane.xlu0 %895
  %v897 = vsel %vm266, %v218, 0.0
  %898 = vadd.xlane.f32.xlu0 %v897
  %v899 = vpop.xlane.xlu0 %898
  %v900 = vsel %vm266, %v219, 0.0
  %901 = vadd.xlane.f32.xlu0 %v900
  %v902 = vpop.xlane.xlu0 %901
  %v903 = vsel %vm266, %v220, 0.0
  %904 = vadd.xlane.f32.xlu0 %v903
  %v905 = vpop.xlane.xlu0 %904
  %v906 = vsel %vm266, %v221, 0.0
  %907 = vadd.xlane.f32.xlu0 %v906
  %v908 = vpop.xlane.xlu0 %907
  %v909 = vsel %vm266, %v222, 0.0
  %910 = vadd.xlane.f32.xlu0 %v909
  %v911 = vpop.xlane.xlu0 %910
  %v912 = vsel %vm266, %v223, 0.0
  %913 = vadd.xlane.f32.xlu0 %v912
  %v914 = vpop.xlane.xlu0 %913
  %v915 = vsel %vm266, %v224, 0.0
  %916 = vadd.xlane.f32.xlu0 %v915
  %v917 = vpop.xlane.xlu0 %916
  %v918 = vsel %vm266, %v225, 0.0
  %919 = vadd.xlane.f32.xlu0 %v918
  %v920 = vpop.xlane.xlu0 %919
  %v921 = vsel %vm266, %v226, 0.0
  %922 = vadd.xlane.f32.xlu0 %v921
  %v923 = vpop.xlane.xlu0 %922
  %v924 = vsel %vm266, %v227, 0.0
  %925 = vadd.xlane.f32.xlu0 %v924
  %v926 = vpop.xlane.xlu0 %925
  %v927 = vsel %vm266, %v228, 0.0
  %928 = vadd.xlane.f32.xlu0 %v927
  %v929 = vpop.xlane.xlu0 %928
  %v930 = vsel %vm266, %v229, 0.0
  %931 = vadd.xlane.f32.xlu0 %v930
  %v932 = vpop.xlane.xlu0 %931
  %v933 = vsel %vm266, %v230, 0.0
  %934 = vadd.xlane.f32.xlu0 %v933
  %v935 = vpop.xlane.xlu0 %934
  %v936 = vsel %vm266, %v231, 0.0
  %937 = vadd.xlane.f32.xlu0 %v936
  %v938 = vpop.xlane.xlu0 %937
  %v939 = vsel %vm266, %v232, 0.0
  %940 = vadd.xlane.f32.xlu0 %v939
  %v941 = vpop.xlane.xlu0 %940
  %v942 = vsel %vm266, %v233, 0.0
  %943 = vadd.xlane.f32.xlu0 %v942
  %v944 = vpop.xlane.xlu0 %943
  %v945 = vsel %vm266, %v234, 0.0
  %946 = vadd.xlane.f32.xlu0 %v945
  %v947 = vpop.xlane.xlu0 %946
  %v948 = vsel %vm266, %v235, 0.0
  %949 = vadd.xlane.f32.xlu0 %v948
  %v950 = vpop.xlane.xlu0 %949
  %v951 = vsel %vm266, %v236, 0.0
  %952 = vadd.xlane.f32.xlu0 %v951
  %v953 = vpop.xlane.xlu0 %952
  %v954 = vsel %vm266, %v237, 0.0
  %955 = vadd.xlane.f32.xlu0 %v954
  %v956 = vpop.xlane.xlu0 %955
  %v957 = vsel %vm266, %v238, 0.0
  %958 = vadd.xlane.f32.xlu0 %v957
  %v959 = vpop.xlane.xlu0 %958
  %v960 = vsel %vm266, %v239, 0.0
  %961 = vadd.xlane.f32.xlu0 %v960
  %v962 = vpop.xlane.xlu0 %961
  %v963 = vsel %vm266, %v240, 0.0
  %964 = vadd.xlane.f32.xlu0 %v963
  %v965 = vpop.xlane.xlu0 %964
  %v966 = vsel %vm266, %v241, 0.0
  %967 = vadd.xlane.f32.xlu0 %v966
  %v968 = vpop.xlane.xlu0 %967
  %v969 = vsel %vm266, %v242, 0.0
  %970 = vadd.xlane.f32.xlu0 %v969
  %v971 = vpop.xlane.xlu0 %970
  %v972 = vsel %vm266, %v243, 0.0
  %973 = vadd.xlane.f32.xlu0 %v972
  %v974 = vpop.xlane.xlu0 %973
  %v975 = vsel %vm266, %v244, 0.0
  %976 = vadd.xlane.f32.xlu0 %v975
  %v977 = vpop.xlane.xlu0 %976
  %v978 = vsel %vm266, %v245, 0.0
  %979 = vadd.xlane.f32.xlu0 %v978
  %v980 = vpop.xlane.xlu0 %979
  %v981 = vsel %vm266, %v246, 0.0
  %982 = vadd.xlane.f32.xlu0 %v981
  %v983 = vpop.xlane.xlu0 %982
  %v984 = vsel %vm266, %v247, 0.0
  %985 = vadd.xlane.f32.xlu0 %v984
  %v986 = vpop.xlane.xlu0 %985
  %v987 = vsel %vm266, %v248, 0.0
  %988 = vadd.xlane.f32.xlu0 %v987
  %v989 = vpop.xlane.xlu0 %988
  %v990 = vsel %vm266, %v249, 0.0
  %991 = vadd.xlane.f32.xlu0 %v990
  %v992 = vpop.xlane.xlu0 %991
  %v993 = vsel %vm266, %v250, 0.0
  %994 = vadd.xlane.f32.xlu0 %v993
  %v995 = vpop.xlane.xlu0 %994
  %v996 = vsel %vm266, %v251, 0.0
  %997 = vadd.xlane.f32.xlu0 %v996
  %v998 = vpop.xlane.xlu0 %997
  %v999 = vsel %vm266, %v252, 0.0
  %1000 = vadd.xlane.f32.xlu0 %v999
  %v1001 = vpop.xlane.xlu0 %1000
  %v1002 = vsel %vm266, %v253, 0.0
  %1003 = vadd.xlane.f32.xlu0 %v1002
  %v1004 = vpop.xlane.xlu0 %1003
  %v1005 = vsel %vm266, %v254, 0.0
  %1006 = vadd.xlane.f32.xlu0 %v1005
  %v1007 = vpop.xlane.xlu0 %1006
  %v1008 = vsel %vm266, %v255, 0.0
  %1009 = vadd.xlane.f32.xlu0 %v1008
  %v1010 = vpop.xlane.xlu0 %1009
  %v1011 = vsel %vm266, %v256, 0.0
  %1012 = vadd.xlane.f32.xlu0 %v1011
  %v1013 = vpop.xlane.xlu0 %1012
  %v1014 = vsel %vm266, %v257, 0.0
  %1015 = vadd.xlane.f32.xlu0 %v1014
  %v1016 = vpop.xlane.xlu0 %1015
  %v1017 = vsel %vm266, %v258, 0.0
  %1018 = vadd.xlane.f32.xlu0 %v1017
  %v1019 = vpop.xlane.xlu0 %1018
  %v1020 = vsel %vm266, %v259, 0.0
  %1021 = vadd.xlane.f32.xlu0 %v1020
  %v1022 = vpop.xlane.xlu0 %1021
  %v1023 = vsel %vm266, %v260, 0.0
  %1024 = vadd.xlane.f32.xlu0 %v1023
  %v1025 = vpop.xlane.xlu0 %1024
  %v1026 = vsel %vm266, %v261, 0.0
  %1027 = vadd.xlane.f32.xlu0 %v1026
  %v1028 = vpop.xlane.xlu0 %1027
  %v1029 = vsel %vm266, %v262, 0.0
  %1030 = vadd.xlane.f32.xlu0 %v1029
  %v1031 = vpop.xlane.xlu0 %1030
  %v1032 = vsel %vm266, %v263, 0.0
  %1033 = vadd.xlane.f32.xlu0 %v1032
  %v1034 = vpop.xlane.xlu0 %1033
  %v1035 = vsel %vm266, %v264, 0.0
  %1036 = vadd.xlane.f32.xlu0 %v1035
  %v1037 = vpop.xlane.xlu0 %1036
  %v1038 = vsel %vm266, %v265, 0.0
  %1039 = vadd.xlane.f32.xlu0 %v1038
  %v1040 = vpop.xlane.xlu0 %1039
  %v1041 = vmul.f32 %v269, 0.020408163
  %v1042 = vmul.f32 %v272, 0.020408163
  %v1043 = vmul.f32 %v275, 0.020408163
  %v1044 = vmul.f32 %v278, 0.020408163
  %v1045 = vmul.f32 %v281, 0.020408163
  %v1046 = vmul.f32 %v284, 0.020408163
  %v1047 = vmul.f32 %v287, 0.020408163
  %v1048 = vmul.f32 %v290, 0.020408163
  %v1049 = vmul.f32 %v293, 0.020408163
  %v1050 = vmul.f32 %v296, 0.020408163
  %v1051 = vmul.f32 %v299, 0.020408163
  %v1052 = vmul.f32 %v302, 0.020408163
  %v1053 = vmul.f32 %v305, 0.020408163
  %v1054 = vmul.f32 %v308, 0.020408163
  %v1055 = vmul.f32 %v311, 0.020408163
  %v1056 = vmul.f32 %v314, 0.020408163
  %v1057 = vmul.f32 %v317, 0.020408163
  %v1058 = vmul.f32 %v320, 0.020408163
  %v1059 = vmul.f32 %v323, 0.020408163
  %v1060 = vmul.f32 %v326, 0.020408163
  %v1061 = vmul.f32 %v329, 0.020408163
  %v1062 = vmul.f32 %v332, 0.020408163
  %v1063 = vmul.f32 %v335, 0.020408163
  %v1064 = vmul.f32 %v338, 0.020408163
  %v1065 = vmul.f32 %v341, 0.020408163
  %v1066 = vmul.f32 %v344, 0.020408163
  %v1067 = vmul.f32 %v347, 0.020408163
  %v1068 = vmul.f32 %v350, 0.020408163
  %v1069 = vmul.f32 %v353, 0.020408163
  %v1070 = vmul.f32 %v356, 0.020408163
  %v1071 = vmul.f32 %v359, 0.020408163
  %v1072 = vmul.f32 %v362, 0.020408163
  %v1073 = vmul.f32 %v365, 0.020408163
  %v1074 = vmul.f32 %v368, 0.020408163
  %v1075 = vmul.f32 %v371, 0.020408163
  %v1076 = vmul.f32 %v374, 0.020408163
  %v1077 = vmul.f32 %v377, 0.020408163
  %v1078 = vmul.f32 %v380, 0.020408163
  %v1079 = vmul.f32 %v383, 0.020408163
  %v1080 = vmul.f32 %v386, 0.020408163
  %v1081 = vmul.f32 %v389, 0.020408163
  %v1082 = vmul.f32 %v392, 0.020408163
  %v1083 = vmul.f32 %v395, 0.020408163
  %v1084 = vmul.f32 %v398, 0.020408163
  %v1085 = vmul.f32 %v401, 0.020408163
  %v1086 = vmul.f32 %v404, 0.020408163
  %v1087 = vmul.f32 %v407, 0.020408163
  %v1088 = vmul.f32 %v410, 0.020408163
  %v1089 = vmul.f32 %v413, 0.020408163
  %v1090 = vmul.f32 %v416, 0.020408163
  %v1091 = vmul.f32 %v419, 0.020408163
  %v1092 = vmul.f32 %v422, 0.020408163
  %v1093 = vmul.f32 %v425, 0.020408163
  %v1094 = vmul.f32 %v428, 0.020408163
  %v1095 = vmul.f32 %v431, 0.020408163
  %v1096 = vmul.f32 %v434, 0.020408163
  %v1097 = vmul.f32 %v437, 0.020408163
  %v1098 = vmul.f32 %v440, 0.020408163
  %v1099 = vmul.f32 %v443, 0.020408163
  %v1100 = vmul.f32 %v446, 0.020408163
  %v1101 = vmul.f32 %v449, 0.020408163
  %v1102 = vmul.f32 %v452, 0.020408163
  %v1103 = vmul.f32 %v455, 0.020408163
  %v1104 = vmul.f32 %v458, 0.020408163
  %v1105 = vmul.f32 %v461, 0.020408163
  %v1106 = vmul.f32 %v464, 0.020408163
  %v1107 = vmul.f32 %v467, 0.020408163
  %v1108 = vmul.f32 %v470, 0.020408163
  %v1109 = vmul.f32 %v473, 0.020408163
  %v1110 = vmul.f32 %v476, 0.020408163
  %v1111 = vmul.f32 %v479, 0.020408163
  %v1112 = vmul.f32 %v482, 0.020408163
  %v1113 = vmul.f32 %v485, 0.020408163
  %v1114 = vmul.f32 %v488, 0.020408163
  %v1115 = vmul.f32 %v491, 0.020408163
  %v1116 = vmul.f32 %v494, 0.020408163
  %v1117 = vmul.f32 %v497, 0.020408163
  %v1118 = vmul.f32 %v500, 0.020408163
  %v1119 = vmul.f32 %v503, 0.020408163
  %v1120 = vmul.f32 %v506, 0.020408163
  %v1121 = vmul.f32 %v509, 0.020408163
  %v1122 = vmul.f32 %v512, 0.020408163
  %v1123 = vmul.f32 %v515, 0.020408163
  %v1124 = vmul.f32 %v518, 0.020408163
  %v1125 = vmul.f32 %v521, 0.020408163
  %v1126 = vmul.f32 %v524, 0.020408163
  %v1127 = vmul.f32 %v527, 0.020408163
  %v1128 = vmul.f32 %v530, 0.020408163
  %v1129 = vmul.f32 %v533, 0.020408163
  %v1130 = vmul.f32 %v536, 0.020408163
  %v1131 = vmul.f32 %v539, 0.020408163
  %v1132 = vmul.f32 %v542, 0.020408163
  %v1133 = vmul.f32 %v545, 0.020408163
  %v1134 = vmul.f32 %v548, 0.020408163
  %v1135 = vmul.f32 %v551, 0.020408163
  %v1136 = vmul.f32 %v554, 0.020408163
  %v1137 = vmul.f32 %v557, 0.020408163
  %v1138 = vmul.f32 %v560, 0.020408163
  %v1139 = vmul.f32 %v563, 0.020408163
  %v1140 = vmul.f32 %v566, 0.020408163
  %v1141 = vmul.f32 %v569, 0.020408163
  %v1142 = vmul.f32 %v572, 0.020408163
  %v1143 = vmul.f32 %v575, 0.020408163
  %v1144 = vmul.f32 %v578, 0.020408163
  %v1145 = vmul.f32 %v581, 0.020408163
  %v1146 = vmul.f32 %v584, 0.020408163
  %v1147 = vmul.f32 %v587, 0.020408163
  %v1148 = vmul.f32 %v590, 0.020408163
  %v1149 = vmul.f32 %v593, 0.020408163
  %v1150 = vmul.f32 %v596, 0.020408163
  %v1151 = vmul.f32 %v599, 0.020408163
  %v1152 = vmul.f32 %v602, 0.020408163
  %v1153 = vmul.f32 %v605, 0.020408163
  %v1154 = vmul.f32 %v608, 0.020408163
  %v1155 = vmul.f32 %v611, 0.020408163
  %v1156 = vmul.f32 %v614, 0.020408163
  %v1157 = vmul.f32 %v617, 0.020408163
  %v1158 = vmul.f32 %v620, 0.020408163
  %v1159 = vmul.f32 %v623, 0.020408163
  %v1160 = vmul.f32 %v626, 0.020408163
  %v1161 = vmul.f32 %v629, 0.020408163
  %v1162 = vmul.f32 %v632, 0.020408163
  %v1163 = vmul.f32 %v635, 0.020408163
  %v1164 = vmul.f32 %v638, 0.020408163
  %v1165 = vmul.f32 %v641, 0.020408163
  %v1166 = vmul.f32 %v644, 0.020408163
  %v1167 = vmul.f32 %v647, 0.020408163
  %v1168 = vmul.f32 %v650, 0.020408163
  %v1169 = vmul.f32 %v653, 0.020408163
  %v1170 = vmul.f32 %v656, 0.020408163
  %v1171 = vmul.f32 %v659, 0.020408163
  %v1172 = vmul.f32 %v662, 0.020408163
  %v1173 = vmul.f32 %v665, 0.020408163
  %v1174 = vmul.f32 %v668, 0.020408163
  %v1175 = vmul.f32 %v671, 0.020408163
  %v1176 = vmul.f32 %v674, 0.020408163
  %v1177 = vmul.f32 %v677, 0.020408163
  %v1178 = vmul.f32 %v680, 0.020408163
  %v1179 = vmul.f32 %v683, 0.020408163
  %v1180 = vmul.f32 %v686, 0.020408163
  %v1181 = vmul.f32 %v689, 0.020408163
  %v1182 = vmul.f32 %v692, 0.020408163
  %v1183 = vmul.f32 %v695, 0.020408163
  %v1184 = vmul.f32 %v698, 0.020408163
  %v1185 = vmul.f32 %v701, 0.020408163
  %v1186 = vmul.f32 %v704, 0.020408163
  %v1187 = vmul.f32 %v707, 0.020408163
  %v1188 = vmul.f32 %v710, 0.020408163
  %v1189 = vmul.f32 %v713, 0.020408163
  %v1190 = vmul.f32 %v716, 0.020408163
  %v1191 = vmul.f32 %v719, 0.020408163
  %v1192 = vmul.f32 %v722, 0.020408163
  %v1193 = vmul.f32 %v725, 0.020408163
  %v1194 = vmul.f32 %v728, 0.020408163
  %v1195 = vmul.f32 %v731, 0.020408163
  %v1196 = vmul.f32 %v734, 0.020408163
  %v1197 = vmul.f32 %v737, 0.020408163
  %v1198 = vmul.f32 %v740, 0.020408163
  %v1199 = vmul.f32 %v743, 0.020408163
  %v1200 = vmul.f32 %v746, 0.020408163
  %v1201 = vmul.f32 %v749, 0.020408163
  %v1202 = vmul.f32 %v752, 0.020408163
  %v1203 = vmul.f32 %v755, 0.020408163
  %v1204 = vmul.f32 %v758, 0.020408163
  %v1205 = vmul.f32 %v761, 0.020408163
  %v1206 = vmul.f32 %v764, 0.020408163
  %v1207 = vmul.f32 %v767, 0.020408163
  %v1208 = vmul.f32 %v770, 0.020408163
  %v1209 = vmul.f32 %v773, 0.020408163
  %v1210 = vmul.f32 %v776, 0.020408163
  %v1211 = vmul.f32 %v779, 0.020408163
  %v1212 = vmul.f32 %v782, 0.020408163
  %v1213 = vmul.f32 %v785, 0.020408163
  %v1214 = vmul.f32 %v788, 0.020408163
  %v1215 = vmul.f32 %v791, 0.020408163
  %v1216 = vmul.f32 %v794, 0.020408163
  %v1217 = vmul.f32 %v797, 0.020408163
  %v1218 = vmul.f32 %v800, 0.020408163
  %v1219 = vmul.f32 %v803, 0.020408163
  %v1220 = vmul.f32 %v806, 0.020408163
  %v1221 = vmul.f32 %v809, 0.020408163
  %v1222 = vmul.f32 %v812, 0.020408163
  %v1223 = vmul.f32 %v815, 0.020408163
  %v1224 = vmul.f32 %v818, 0.020408163
  %v1225 = vmul.f32 %v821, 0.020408163
  %v1226 = vmul.f32 %v824, 0.020408163
  %v1227 = vmul.f32 %v827, 0.020408163
  %v1228 = vmul.f32 %v830, 0.020408163
  %v1229 = vmul.f32 %v833, 0.020408163
  %v1230 = vmul.f32 %v836, 0.020408163
  %v1231 = vmul.f32 %v839, 0.020408163
  %v1232 = vmul.f32 %v842, 0.020408163
  %v1233 = vmul.f32 %v845, 0.020408163
  %v1234 = vmul.f32 %v848, 0.020408163
  %v1235 = vmul.f32 %v851, 0.020408163
  %v1236 = vmul.f32 %v854, 0.020408163
  %v1237 = vmul.f32 %v857, 0.020408163
  %v1238 = vmul.f32 %v860, 0.020408163
  %v1239 = vmul.f32 %v863, 0.020408163
  %v1240 = vmul.f32 %v866, 0.020408163
  %v1241 = vmul.f32 %v869, 0.020408163
  %v1242 = vmul.f32 %v872, 0.020408163
  %v1243 = vmul.f32 %v875, 0.020408163
  %v1244 = vmul.f32 %v878, 0.020408163
  %v1245 = vmul.f32 %v881, 0.020408163
  %v1246 = vmul.f32 %v884, 0.020408163
  %v1247 = vmul.f32 %v887, 0.020408163
  %v1248 = vmul.f32 %v890, 0.020408163
  %v1249 = vmul.f32 %v893, 0.020408163
  %v1250 = vmul.f32 %v896, 0.020408163
  %v1251 = vmul.f32 %v899, 0.020408163
  %v1252 = vmul.f32 %v902, 0.020408163
  %v1253 = vmul.f32 %v905, 0.020408163
  %v1254 = vmul.f32 %v908, 0.020408163
  %v1255 = vmul.f32 %v911, 0.020408163
  %v1256 = vmul.f32 %v914, 0.020408163
  %v1257 = vmul.f32 %v917, 0.020408163
  %v1258 = vmul.f32 %v920, 0.020408163
  %v1259 = vmul.f32 %v923, 0.020408163
  %v1260 = vmul.f32 %v926, 0.020408163
  %v1261 = vmul.f32 %v929, 0.020408163
  %v1262 = vmul.f32 %v932, 0.020408163
  %v1263 = vmul.f32 %v935, 0.020408163
  %v1264 = vmul.f32 %v938, 0.020408163
  %v1265 = vmul.f32 %v941, 0.020408163
  %v1266 = vmul.f32 %v944, 0.020408163
  %v1267 = vmul.f32 %v947, 0.020408163
  %v1268 = vmul.f32 %v950, 0.020408163
  %v1269 = vmul.f32 %v953, 0.020408163
  %v1270 = vmul.f32 %v956, 0.020408163
  %v1271 = vmul.f32 %v959, 0.020408163
  %v1272 = vmul.f32 %v962, 0.020408163
  %v1273 = vmul.f32 %v965, 0.020408163
  %v1274 = vmul.f32 %v968, 0.020408163
  %v1275 = vmul.f32 %v971, 0.020408163
  %v1276 = vmul.f32 %v974, 0.020408163
  %v1277 = vmul.f32 %v977, 0.020408163
  %v1278 = vmul.f32 %v980, 0.020408163
  %v1279 = vmul.f32 %v983, 0.020408163
  %v1280 = vmul.f32 %v986, 0.020408163
  %v1281 = vmul.f32 %v989, 0.020408163
  %v1282 = vmul.f32 %v992, 0.020408163
  %v1283 = vmul.f32 %v995, 0.020408163
  %v1284 = vmul.f32 %v998, 0.020408163
  %v1285 = vmul.f32 %v1001, 0.020408163
  %v1286 = vmul.f32 %v1004, 0.020408163
  %v1287 = vmul.f32 %v1007, 0.020408163
  %v1288 = vmul.f32 %v1010, 0.020408163
  %v1289 = vmul.f32 %v1013, 0.020408163
  %v1290 = vmul.f32 %v1016, 0.020408163
  %v1291 = vmul.f32 %v1019, 0.020408163
  %v1292 = vmul.f32 %v1022, 0.020408163
  %v1293 = vmul.f32 %v1025, 0.020408163
  %v1294 = vmul.f32 %v1028, 0.020408163
  %v1295 = vmul.f32 %v1031, 0.020408163
  %v1296 = vmul.f32 %v1034, 0.020408163
  %v1297 = vmul.f32 %v1037, 0.020408163
  %v1298 = vmul.f32 %v1040, 0.020408163
  %vm1299 = vcmask 7168
  %1300 = vst.msk [vmem:[%s1] sm:$0xff] %vm1299, %v1041
  %1301 = vst.msk [vmem:[%s1 + $0x8] sm:$0xff] %vm1299, %v1042
  %1302 = vst.msk [vmem:[%s1 + $0x10] sm:$0xff] %vm1299, %v1043
  %1303 = vst.msk [vmem:[%s1 + $0x18] sm:$0xff] %vm1299, %v1044
  %1304 = vst.msk [vmem:[%s1 + $0x20] sm:$0xff] %vm1299, %v1045
  %1305 = vst.msk [vmem:[%s1 + $0x28] sm:$0xff] %vm1299, %v1046
  %1306 = vst.msk [vmem:[%s1 + $0x30] sm:$0xff] %vm1299, %v1047
  %1307 = vst.msk [vmem:[%s1 + $0x38] sm:$0xff] %vm1299, %v1048
  %1308 = vst.msk [vmem:[%s1 + $0x40] sm:$0xff] %vm1299, %v1049
  %1309 = vst.msk [vmem:[%s1 + $0x48] sm:$0xff] %vm1299, %v1050
  %1310 = vst.msk [vmem:[%s1 + $0x50] sm:$0xff] %vm1299, %v1051
  %1311 = vst.msk [vmem:[%s1 + $0x58] sm:$0xff] %vm1299, %v1052
  %1312 = vst.msk [vmem:[%s1 + $0x60] sm:$0xff] %vm1299, %v1053
  %1313 = vst.msk [vmem:[%s1 + $0x68] sm:$0xff] %vm1299, %v1054
  %1314 = vst.msk [vmem:[%s1 + $0x70] sm:$0xff] %vm1299, %v1055
  %1315 = vst.msk [vmem:[%s1 + $0x78] sm:$0xff] %vm1299, %v1056
  %1316 = vst.msk [vmem:[%s1 + $0x80] sm:$0xff] %vm1299, %v1057
  %1317 = vst.msk [vmem:[%s1 + $0x88] sm:$0xff] %vm1299, %v1058
  %1318 = vst.msk [vmem:[%s1 + $0x90] sm:$0xff] %vm1299, %v1059
  %1319 = vst.msk [vmem:[%s1 + $0x98] sm:$0xff] %vm1299, %v1060
  %1320 = vst.msk [vmem:[%s1 + $0xa0] sm:$0xff] %vm1299, %v1061
  %1321 = vst.msk [vmem:[%s1 + $0xa8] sm:$0xff] %vm1299, %v1062
  %1322 = vst.msk [vmem:[%s1 + $0xb0] sm:$0xff] %vm1299, %v1063
  %1323 = vst.msk [vmem:[%s1 + $0xb8] sm:$0xff] %vm1299, %v1064
  %1324 = vst.msk [vmem:[%s1 + $0xc0] sm:$0xff] %vm1299, %v1065
  %1325 = vst.msk [vmem:[%s1 + $0xc8] sm:$0xff] %vm1299, %v1066
  %1326 = vst.msk [vmem:[%s1 + $0xd0] sm:$0xff] %vm1299, %v1067
  %1327 = vst.msk [vmem:[%s1 + $0xd8] sm:$0xff] %vm1299, %v1068
  %1328 = vst.msk [vmem:[%s1 + $0xe0] sm:$0xff] %vm1299, %v1069
  %1329 = vst.msk [vmem:[%s1 + $0xe8] sm:$0xff] %vm1299, %v1070
  %1330 = vst.msk [vmem:[%s1 + $0xf0] sm:$0xff] %vm1299, %v1071
  %1331 = vst.msk [vmem:[%s1 + $0xf8] sm:$0xff] %vm1299, %v1072
  %1332 = vst.msk [vmem:[%s1 + $0x100] sm:$0xff] %vm1299, %v1073
  %1333 = vst.msk [vmem:[%s1 + $0x108] sm:$0xff] %vm1299, %v1074
  %1334 = vst.msk [vmem:[%s1 + $0x110] sm:$0xff] %vm1299, %v1075
  %1335 = vst.msk [vmem:[%s1 + $0x118] sm:$0xff] %vm1299, %v1076
  %1336 = vst.msk [vmem:[%s1 + $0x120] sm:$0xff] %vm1299, %v1077
  %1337 = vst.msk [vmem:[%s1 + $0x128] sm:$0xff] %vm1299, %v1078
  %1338 = vst.msk [vmem:[%s1 + $0x130] sm:$0xff] %vm1299, %v1079
  %1339 = vst.msk [vmem:[%s1 + $0x138] sm:$0xff] %vm1299, %v1080
  %1340 = vst.msk [vmem:[%s1 + $0x140] sm:$0xff] %vm1299, %v1081
  %1341 = vst.msk [vmem:[%s1 + $0x148] sm:$0xff] %vm1299, %v1082
  %1342 = vst.msk [vmem:[%s1 + $0x150] sm:$0xff] %vm1299, %v1083
  %1343 = vst.msk [vmem:[%s1 + $0x158] sm:$0xff] %vm1299, %v1084
  %1344 = vst.msk [vmem:[%s1 + $0x160] sm:$0xff] %vm1299, %v1085
  %1345 = vst.msk [vmem:[%s1 + $0x168] sm:$0xff] %vm1299, %v1086
  %1346 = vst.msk [vmem:[%s1 + $0x170] sm:$0xff] %vm1299, %v1087
  %1347 = vst.msk [vmem:[%s1 + $0x178] sm:$0xff] %vm1299, %v1088
  %1348 = vst.msk [vmem:[%s1 + $0x180] sm:$0xff] %vm1299, %v1089
  %1349 = vst.msk [vmem:[%s1 + $0x188] sm:$0xff] %vm1299, %v1090
  %1350 = vst.msk [vmem:[%s1 + $0x190] sm:$0xff] %vm1299, %v1091
  %1351 = vst.msk [vmem:[%s1 + $0x198] sm:$0xff] %vm1299, %v1092
  %1352 = vst.msk [vmem:[%s1 + $0x1a0] sm:$0xff] %vm1299, %v1093
  %1353 = vst.msk [vmem:[%s1 + $0x1a8] sm:$0xff] %vm1299, %v1094
  %1354 = vst.msk [vmem:[%s1 + $0x1b0] sm:$0xff] %vm1299, %v1095
  %1355 = vst.msk [vmem:[%s1 + $0x1b8] sm:$0xff] %vm1299, %v1096
  %1356 = vst.msk [vmem:[%s1 + $0x1c0] sm:$0xff] %vm1299, %v1097
  %1357 = vst.msk [vmem:[%s1 + $0x1c8] sm:$0xff] %vm1299, %v1098
  %1358 = vst.msk [vmem:[%s1 + $0x1d0] sm:$0xff] %vm1299, %v1099
  %1359 = vst.msk [vmem:[%s1 + $0x1d8] sm:$0xff] %vm1299, %v1100
  %1360 = vst.msk [vmem:[%s1 + $0x1e0] sm:$0xff] %vm1299, %v1101
  %1361 = vst.msk [vmem:[%s1 + $0x1e8] sm:$0xff] %vm1299, %v1102
  %1362 = vst.msk [vmem:[%s1 + $0x1f0] sm:$0xff] %vm1299, %v1103
  %1363 = vst.msk [vmem:[%s1 + $0x1f8] sm:$0xff] %vm1299, %v1104
  %1364 = vst.msk [vmem:[%s1 + $0x200] sm:$0xff] %vm1299, %v1105
  %1365 = vst.msk [vmem:[%s1 + $0x208] sm:$0xff] %vm1299, %v1106
  %1366 = vst.msk [vmem:[%s1 + $0x210] sm:$0xff] %vm1299, %v1107
  %1367 = vst.msk [vmem:[%s1 + $0x218] sm:$0xff] %vm1299, %v1108
  %1368 = vst.msk [vmem:[%s1 + $0x220] sm:$0xff] %vm1299, %v1109
  %1369 = vst.msk [vmem:[%s1 + $0x228] sm:$0xff] %vm1299, %v1110
  %1370 = vst.msk [vmem:[%s1 + $0x230] sm:$0xff] %vm1299, %v1111
  %1371 = vst.msk [vmem:[%s1 + $0x238] sm:$0xff] %vm1299, %v1112
  %1372 = vst.msk [vmem:[%s1 + $0x240] sm:$0xff] %vm1299, %v1113
  %1373 = vst.msk [vmem:[%s1 + $0x248] sm:$0xff] %vm1299, %v1114
  %1374 = vst.msk [vmem:[%s1 + $0x250] sm:$0xff] %vm1299, %v1115
  %1375 = vst.msk [vmem:[%s1 + $0x258] sm:$0xff] %vm1299, %v1116
  %1376 = vst.msk [vmem:[%s1 + $0x260] sm:$0xff] %vm1299, %v1117
  %1377 = vst.msk [vmem:[%s1 + $0x268] sm:$0xff] %vm1299, %v1118
  %1378 = vst.msk [vmem:[%s1 + $0x270] sm:$0xff] %vm1299, %v1119
  %1379 = vst.msk [vmem:[%s1 + $0x278] sm:$0xff] %vm1299, %v1120
  %1380 = vst.msk [vmem:[%s1 + $0x280] sm:$0xff] %vm1299, %v1121
  %1381 = vst.msk [vmem:[%s1 + $0x288] sm:$0xff] %vm1299, %v1122
  %1382 = vst.msk [vmem:[%s1 + $0x290] sm:$0xff] %vm1299, %v1123
  %1383 = vst.msk [vmem:[%s1 + $0x298] sm:$0xff] %vm1299, %v1124
  %1384 = vst.msk [vmem:[%s1 + $0x2a0] sm:$0xff] %vm1299, %v1125
  %1385 = vst.msk [vmem:[%s1 + $0x2a8] sm:$0xff] %vm1299, %v1126
  %1386 = vst.msk [vmem:[%s1 + $0x2b0] sm:$0xff] %vm1299, %v1127
  %1387 = vst.msk [vmem:[%s1 + $0x2b8] sm:$0xff] %vm1299, %v1128
  %1388 = vst.msk [vmem:[%s1 + $0x2c0] sm:$0xff] %vm1299, %v1129
  %1389 = vst.msk [vmem:[%s1 + $0x2c8] sm:$0xff] %vm1299, %v1130
  %1390 = vst.msk [vmem:[%s1 + $0x2d0] sm:$0xff] %vm1299, %v1131
  %1391 = vst.msk [vmem:[%s1 + $0x2d8] sm:$0xff] %vm1299, %v1132
  %1392 = vst.msk [vmem:[%s1 + $0x2e0] sm:$0xff] %vm1299, %v1133
  %1393 = vst.msk [vmem:[%s1 + $0x2e8] sm:$0xff] %vm1299, %v1134
  %1394 = vst.msk [vmem:[%s1 + $0x2f0] sm:$0xff] %vm1299, %v1135
  %1395 = vst.msk [vmem:[%s1 + $0x2f8] sm:$0xff] %vm1299, %v1136
  %1396 = vst.msk [vmem:[%s1 + $0x300] sm:$0xff] %vm1299, %v1137
  %1397 = vst.msk [vmem:[%s1 + $0x308] sm:$0xff] %vm1299, %v1138
  %1398 = vst.msk [vmem:[%s1 + $0x310] sm:$0xff] %vm1299, %v1139
  %1399 = vst.msk [vmem:[%s1 + $0x318] sm:$0xff] %vm1299, %v1140
  %1400 = vst.msk [vmem:[%s1 + $0x320] sm:$0xff] %vm1299, %v1141
  %1401 = vst.msk [vmem:[%s1 + $0x328] sm:$0xff] %vm1299, %v1142
  %1402 = vst.msk [vmem:[%s1 + $0x330] sm:$0xff] %vm1299, %v1143
  %1403 = vst.msk [vmem:[%s1 + $0x338] sm:$0xff] %vm1299, %v1144
  %1404 = vst.msk [vmem:[%s1 + $0x340] sm:$0xff] %vm1299, %v1145
  %1405 = vst.msk [vmem:[%s1 + $0x348] sm:$0xff] %vm1299, %v1146
  %1406 = vst.msk [vmem:[%s1 + $0x350] sm:$0xff] %vm1299, %v1147
  %1407 = vst.msk [vmem:[%s1 + $0x358] sm:$0xff] %vm1299, %v1148
  %1408 = vst.msk [vmem:[%s1 + $0x360] sm:$0xff] %vm1299, %v1149
  %1409 = vst.msk [vmem:[%s1 + $0x368] sm:$0xff] %vm1299, %v1150
  %1410 = vst.msk [vmem:[%s1 + $0x370] sm:$0xff] %vm1299, %v1151
  %1411 = vst.msk [vmem:[%s1 + $0x378] sm:$0xff] %vm1299, %v1152
  %1412 = vst.msk [vmem:[%s1 + $0x380] sm:$0xff] %vm1299, %v1153
  %1413 = vst.msk [vmem:[%s1 + $0x388] sm:$0xff] %vm1299, %v1154
  %1414 = vst.msk [vmem:[%s1 + $0x390] sm:$0xff] %vm1299, %v1155
  %1415 = vst.msk [vmem:[%s1 + $0x398] sm:$0xff] %vm1299, %v1156
  %1416 = vst.msk [vmem:[%s1 + $0x3a0] sm:$0xff] %vm1299, %v1157
  %1417 = vst.msk [vmem:[%s1 + $0x3a8] sm:$0xff] %vm1299, %v1158
  %1418 = vst.msk [vmem:[%s1 + $0x3b0] sm:$0xff] %vm1299, %v1159
  %1419 = vst.msk [vmem:[%s1 + $0x3b8] sm:$0xff] %vm1299, %v1160
  %1420 = vst.msk [vmem:[%s1 + $0x3c0] sm:$0xff] %vm1299, %v1161
  %1421 = vst.msk [vmem:[%s1 + $0x3c8] sm:$0xff] %vm1299, %v1162
  %1422 = vst.msk [vmem:[%s1 + $0x3d0] sm:$0xff] %vm1299, %v1163
  %1423 = vst.msk [vmem:[%s1 + $0x3d8] sm:$0xff] %vm1299, %v1164
  %1424 = vst.msk [vmem:[%s1 + $0x3e0] sm:$0xff] %vm1299, %v1165
  %1425 = vst.msk [vmem:[%s1 + $0x3e8] sm:$0xff] %vm1299, %v1166
  %1426 = vst.msk [vmem:[%s1 + $0x3f0] sm:$0xff] %vm1299, %v1167
  %1427 = vst.msk [vmem:[%s1 + $0x3f8] sm:$0xff] %vm1299, %v1168
  %1428 = vst.msk [vmem:[%s1 + $0x400] sm:$0xff] %vm1299, %v1169
  %1429 = vst.msk [vmem:[%s1 + $0x408] sm:$0xff] %vm1299, %v1170
  %1430 = vst.msk [vmem:[%s1 + $0x410] sm:$0xff] %vm1299, %v1171
  %1431 = vst.msk [vmem:[%s1 + $0x418] sm:$0xff] %vm1299, %v1172
  %1432 = vst.msk [vmem:[%s1 + $0x420] sm:$0xff] %vm1299, %v1173
  %1433 = vst.msk [vmem:[%s1 + $0x428] sm:$0xff] %vm1299, %v1174
  %1434 = vst.msk [vmem:[%s1 + $0x430] sm:$0xff] %vm1299, %v1175
  %1435 = vst.msk [vmem:[%s1 + $0x438] sm:$0xff] %vm1299, %v1176
  %1436 = vst.msk [vmem:[%s1 + $0x440] sm:$0xff] %vm1299, %v1177
  %1437 = vst.msk [vmem:[%s1 + $0x448] sm:$0xff] %vm1299, %v1178
  %1438 = vst.msk [vmem:[%s1 + $0x450] sm:$0xff] %vm1299, %v1179
  %1439 = vst.msk [vmem:[%s1 + $0x458] sm:$0xff] %vm1299, %v1180
  %1440 = vst.msk [vmem:[%s1 + $0x460] sm:$0xff] %vm1299, %v1181
  %1441 = vst.msk [vmem:[%s1 + $0x468] sm:$0xff] %vm1299, %v1182
  %1442 = vst.msk [vmem:[%s1 + $0x470] sm:$0xff] %vm1299, %v1183
  %1443 = vst.msk [vmem:[%s1 + $0x478] sm:$0xff] %vm1299, %v1184
  %1444 = vst.msk [vmem:[%s1 + $0x480] sm:$0xff] %vm1299, %v1185
  %1445 = vst.msk [vmem:[%s1 + $0x488] sm:$0xff] %vm1299, %v1186
  %1446 = vst.msk [vmem:[%s1 + $0x490] sm:$0xff] %vm1299, %v1187
  %1447 = vst.msk [vmem:[%s1 + $0x498] sm:$0xff] %vm1299, %v1188
  %1448 = vst.msk [vmem:[%s1 + $0x4a0] sm:$0xff] %vm1299, %v1189
  %1449 = vst.msk [vmem:[%s1 + $0x4a8] sm:$0xff] %vm1299, %v1190
  %1450 = vst.msk [vmem:[%s1 + $0x4b0] sm:$0xff] %vm1299, %v1191
  %1451 = vst.msk [vmem:[%s1 + $0x4b8] sm:$0xff] %vm1299, %v1192
  %1452 = vst.msk [vmem:[%s1 + $0x4c0] sm:$0xff] %vm1299, %v1193
  %1453 = vst.msk [vmem:[%s1 + $0x4c8] sm:$0xff] %vm1299, %v1194
  %1454 = vst.msk [vmem:[%s1 + $0x4d0] sm:$0xff] %vm1299, %v1195
  %1455 = vst.msk [vmem:[%s1 + $0x4d8] sm:$0xff] %vm1299, %v1196
  %1456 = vst.msk [vmem:[%s1 + $0x4e0] sm:$0xff] %vm1299, %v1197
  %1457 = vst.msk [vmem:[%s1 + $0x4e8] sm:$0xff] %vm1299, %v1198
  %1458 = vst.msk [vmem:[%s1 + $0x4f0] sm:$0xff] %vm1299, %v1199
  %1459 = vst.msk [vmem:[%s1 + $0x4f8] sm:$0xff] %vm1299, %v1200
  %1460 = vst.msk [vmem:[%s1 + $0x500] sm:$0xff] %vm1299, %v1201
  %1461 = vst.msk [vmem:[%s1 + $0x508] sm:$0xff] %vm1299, %v1202
  %1462 = vst.msk [vmem:[%s1 + $0x510] sm:$0xff] %vm1299, %v1203
  %1463 = vst.msk [vmem:[%s1 + $0x518] sm:$0xff] %vm1299, %v1204
  %1464 = vst.msk [vmem:[%s1 + $0x520] sm:$0xff] %vm1299, %v1205
  %1465 = vst.msk [vmem:[%s1 + $0x528] sm:$0xff] %vm1299, %v1206
  %1466 = vst.msk [vmem:[%s1 + $0x530] sm:$0xff] %vm1299, %v1207
  %1467 = vst.msk [vmem:[%s1 + $0x538] sm:$0xff] %vm1299, %v1208
  %1468 = vst.msk [vmem:[%s1 + $0x540] sm:$0xff] %vm1299, %v1209
  %1469 = vst.msk [vmem:[%s1 + $0x548] sm:$0xff] %vm1299, %v1210
  %1470 = vst.msk [vmem:[%s1 + $0x550] sm:$0xff] %vm1299, %v1211
  %1471 = vst.msk [vmem:[%s1 + $0x558] sm:$0xff] %vm1299, %v1212
  %1472 = vst.msk [vmem:[%s1 + $0x560] sm:$0xff] %vm1299, %v1213
  %1473 = vst.msk [vmem:[%s1 + $0x568] sm:$0xff] %vm1299, %v1214
  %1474 = vst.msk [vmem:[%s1 + $0x570] sm:$0xff] %vm1299, %v1215
  %1475 = vst.msk [vmem:[%s1 + $0x578] sm:$0xff] %vm1299, %v1216
  %1476 = vst.msk [vmem:[%s1 + $0x580] sm:$0xff] %vm1299, %v1217
  %1477 = vst.msk [vmem:[%s1 + $0x588] sm:$0xff] %vm1299, %v1218
  %1478 = vst.msk [vmem:[%s1 + $0x590] sm:$0xff] %vm1299, %v1219
  %1479 = vst.msk [vmem:[%s1 + $0x598] sm:$0xff] %vm1299, %v1220
  %1480 = vst.msk [vmem:[%s1 + $0x5a0] sm:$0xff] %vm1299, %v1221
  %1481 = vst.msk [vmem:[%s1 + $0x5a8] sm:$0xff] %vm1299, %v1222
  %1482 = vst.msk [vmem:[%s1 + $0x5b0] sm:$0xff] %vm1299, %v1223
  %1483 = vst.msk [vmem:[%s1 + $0x5b8] sm:$0xff] %vm1299, %v1224
  %1484 = vst.msk [vmem:[%s1 + $0x5c0] sm:$0xff] %vm1299, %v1225
  %1485 = vst.msk [vmem:[%s1 + $0x5c8] sm:$0xff] %vm1299, %v1226
  %1486 = vst.msk [vmem:[%s1 + $0x5d0] sm:$0xff] %vm1299, %v1227
  %1487 = vst.msk [vmem:[%s1 + $0x5d8] sm:$0xff] %vm1299, %v1228
  %1488 = vst.msk [vmem:[%s1 + $0x5e0] sm:$0xff] %vm1299, %v1229
  %1489 = vst.msk [vmem:[%s1 + $0x5e8] sm:$0xff] %vm1299, %v1230
  %1490 = vst.msk [vmem:[%s1 + $0x5f0] sm:$0xff] %vm1299, %v1231
  %1491 = vst.msk [vmem:[%s1 + $0x5f8] sm:$0xff] %vm1299, %v1232
  %1492 = vst.msk [vmem:[%s1 + $0x600] sm:$0xff] %vm1299, %v1233
  %1493 = vst.msk [vmem:[%s1 + $0x608] sm:$0xff] %vm1299, %v1234
  %1494 = vst.msk [vmem:[%s1 + $0x610] sm:$0xff] %vm1299, %v1235
  %1495 = vst.msk [vmem:[%s1 + $0x618] sm:$0xff] %vm1299, %v1236
  %1496 = vst.msk [vmem:[%s1 + $0x620] sm:$0xff] %vm1299, %v1237
  %1497 = vst.msk [vmem:[%s1 + $0x628] sm:$0xff] %vm1299, %v1238
  %1498 = vst.msk [vmem:[%s1 + $0x630] sm:$0xff] %vm1299, %v1239
  %1499 = vst.msk [vmem:[%s1 + $0x638] sm:$0xff] %vm1299, %v1240
  %1500 = vst.msk [vmem:[%s1 + $0x640] sm:$0xff] %vm1299, %v1241
  %1501 = vst.msk [vmem:[%s1 + $0x648] sm:$0xff] %vm1299, %v1242
  %1502 = vst.msk [vmem:[%s1 + $0x650] sm:$0xff] %vm1299, %v1243
  %1503 = vst.msk [vmem:[%s1 + $0x658] sm:$0xff] %vm1299, %v1244
  %1504 = vst.msk [vmem:[%s1 + $0x660] sm:$0xff] %vm1299, %v1245
  %1505 = vst.msk [vmem:[%s1 + $0x668] sm:$0xff] %vm1299, %v1246
  %1506 = vst.msk [vmem:[%s1 + $0x670] sm:$0xff] %vm1299, %v1247
  %1507 = vst.msk [vmem:[%s1 + $0x678] sm:$0xff] %vm1299, %v1248
  %1508 = vst.msk [vmem:[%s1 + $0x680] sm:$0xff] %vm1299, %v1249
  %1509 = vst.msk [vmem:[%s1 + $0x688] sm:$0xff] %vm1299, %v1250
  %1510 = vst.msk [vmem:[%s1 + $0x690] sm:$0xff] %vm1299, %v1251
  %1511 = vst.msk [vmem:[%s1 + $0x698] sm:$0xff] %vm1299, %v1252
  %1512 = vst.msk [vmem:[%s1 + $0x6a0] sm:$0xff] %vm1299, %v1253
  %1513 = vst.msk [vmem:[%s1 + $0x6a8] sm:$0xff] %vm1299, %v1254
  %1514 = vst.msk [vmem:[%s1 + $0x6b0] sm:$0xff] %vm1299, %v1255
  %1515 = vst.msk [vmem:[%s1 + $0x6b8] sm:$0xff] %vm1299, %v1256
  %1516 = vst.msk [vmem:[%s1 + $0x6c0] sm:$0xff] %vm1299, %v1257
  %1517 = vst.msk [vmem:[%s1 + $0x6c8] sm:$0xff] %vm1299, %v1258
  %1518 = vst.msk [vmem:[%s1 + $0x6d0] sm:$0xff] %vm1299, %v1259
  %1519 = vst.msk [vmem:[%s1 + $0x6d8] sm:$0xff] %vm1299, %v1260
  %1520 = vst.msk [vmem:[%s1 + $0x6e0] sm:$0xff] %vm1299, %v1261
  %1521 = vst.msk [vmem:[%s1 + $0x6e8] sm:$0xff] %vm1299, %v1262
  %1522 = vst.msk [vmem:[%s1 + $0x6f0] sm:$0xff] %vm1299, %v1263
  %1523 = vst.msk [vmem:[%s1 + $0x6f8] sm:$0xff] %vm1299, %v1264
  %1524 = vst.msk [vmem:[%s1 + $0x700] sm:$0xff] %vm1299, %v1265
  %1525 = vst.msk [vmem:[%s1 + $0x708] sm:$0xff] %vm1299, %v1266
  %1526 = vst.msk [vmem:[%s1 + $0x710] sm:$0xff] %vm1299, %v1267
  %1527 = vst.msk [vmem:[%s1 + $0x718] sm:$0xff] %vm1299, %v1268
  %1528 = vst.msk [vmem:[%s1 + $0x720] sm:$0xff] %vm1299, %v1269
  %1529 = vst.msk [vmem:[%s1 + $0x728] sm:$0xff] %vm1299, %v1270
  %1530 = vst.msk [vmem:[%s1 + $0x730] sm:$0xff] %vm1299, %v1271
  %1531 = vst.msk [vmem:[%s1 + $0x738] sm:$0xff] %vm1299, %v1272
  %1532 = vst.msk [vmem:[%s1 + $0x740] sm:$0xff] %vm1299, %v1273
  %1533 = vst.msk [vmem:[%s1 + $0x748] sm:$0xff] %vm1299, %v1274
  %1534 = vst.msk [vmem:[%s1 + $0x750] sm:$0xff] %vm1299, %v1275
  %1535 = vst.msk [vmem:[%s1 + $0x758] sm:$0xff] %vm1299, %v1276
  %1536 = vst.msk [vmem:[%s1 + $0x760] sm:$0xff] %vm1299, %v1277
  %1537 = vst.msk [vmem:[%s1 + $0x768] sm:$0xff] %vm1299, %v1278
  %1538 = vst.msk [vmem:[%s1 + $0x770] sm:$0xff] %vm1299, %v1279
  %1539 = vst.msk [vmem:[%s1 + $0x778] sm:$0xff] %vm1299, %v1280
  %1540 = vst.msk [vmem:[%s1 + $0x780] sm:$0xff] %vm1299, %v1281
  %1541 = vst.msk [vmem:[%s1 + $0x788] sm:$0xff] %vm1299, %v1282
  %1542 = vst.msk [vmem:[%s1 + $0x790] sm:$0xff] %vm1299, %v1283
  %1543 = vst.msk [vmem:[%s1 + $0x798] sm:$0xff] %vm1299, %v1284
  %1544 = vst.msk [vmem:[%s1 + $0x7a0] sm:$0xff] %vm1299, %v1285
  %1545 = vst.msk [vmem:[%s1 + $0x7a8] sm:$0xff] %vm1299, %v1286
  %1546 = vst.msk [vmem:[%s1 + $0x7b0] sm:$0xff] %vm1299, %v1287
  %1547 = vst.msk [vmem:[%s1 + $0x7b8] sm:$0xff] %vm1299, %v1288
  %1548 = vst.msk [vmem:[%s1 + $0x7c0] sm:$0xff] %vm1299, %v1289
  %1549 = vst.msk [vmem:[%s1 + $0x7c8] sm:$0xff] %vm1299, %v1290
  %1550 = vst.msk [vmem:[%s1 + $0x7d0] sm:$0xff] %vm1299, %v1291
  %1551 = vst.msk [vmem:[%s1 + $0x7d8] sm:$0xff] %vm1299, %v1292
  %1552 = vst.msk [vmem:[%s1 + $0x7e0] sm:$0xff] %vm1299, %v1293
  %1553 = vst.msk [vmem:[%s1 + $0x7e8] sm:$0xff] %vm1299, %v1294
  %1554 = vst.msk [vmem:[%s1 + $0x7f0] sm:$0xff] %vm1299, %v1295
  %1555 = vst.msk [vmem:[%s1 + $0x7f8] sm:$0xff] %vm1299, %v1296
  %1556 = vst.msk [vmem:[%s1 + $0x800] sm:$0xff] %vm1299, %v1297
  %1557 = vst.msk [vmem:[%s1 + $0x808] sm:$0xff] %vm1299, %v1298
  // Predicated region
  $region6: #{tpu_custom_call.1} parent=0 // pred_check
    _
  $region7: #{tpu_custom_call.1} parent=0 // pred_check_branch
    %1559 = sbr.rel (0) target = $region9
  $region8: #{tpu_custom_call.1} parent=0 // pred_region
    _
  $region9: #{tpu_custom_call.1} parent=0 // pred_fallthru
    _
  // Predicated region
  $region10: #{tpu_custom_call.1} parent=0 // pred_check
    _
  $region11: #{tpu_custom_call.1} parent=0 // pred_check_branch
    %1561 = sbr.rel (0) target = $region13
  $region12: #{tpu_custom_call.1} parent=0 // pred_region
    _
  $region13: #{tpu_custom_call.1} parent=0 // pred_fallthru
    _

</llo_original>
